<compile_context>
chip_gen: v6e
topology: v6e:2x2x1
jax: 0.10.0
libtpu: 0.0.40
codegen_flags: <defaults>
</compile_context>

<pallas_src>
import functools
import math

import jax
import jax.numpy as jnp
from jax import lax
from jax.experimental import pallas as pl
from jax.experimental.pallas import tpu as pltpu


def _squeezed():
    # pl.Squeezed() on current jax; `None` is the legacy spelling with identical meaning.
    return pl.Squeezed() if hasattr(pl, "Squeezed") else None


def _silu(v):
    return v * jax.nn.sigmoid(v)


# ----------------------------------------------------------------------------
# In-kernel helpers (operate on VMEM-resident values, all stats/acc in f32).
# ----------------------------------------------------------------------------
def _group_norm_silu(x, gmask, gamma, beta, n_per_group, eps):
    """SiLU(GroupNorm(x)).  x: (C, L) f32; gmask: (C, C) group-membership (f32);
    gamma/beta: (C, 1) f32; n_per_group = (C//groups) * L."""
    # Lane (XLU) reduction first, then one tiny matmul does the per-group
    # reduce + broadcast back to per-channel in a single shot.
    rs = jnp.sum(x, axis=1, keepdims=True)                                # (C, 1)
    mean = jnp.dot(gmask, rs, preferred_element_type=jnp.float32) / n_per_group
    d = x - mean
    ss = jnp.sum(d * d, axis=1, keepdims=True)                            # (C, 1)
    var = jnp.dot(gmask, ss, preferred_element_type=jnp.float32) / n_per_group
    y = d * lax.rsqrt(var + eps) * gamma + beta
    return _silu(y)


def _conv3_same(a, w_mat, b_col):
    """Conv1d(k=3, padding=1) as ONE MXU matmul with K = 3*C.
    a: (C, L) f32 activations; w_mat: (Cout, 3*C) bf16 with
    w_mat[o, k*C + i] = w[o, i, k]; b_col: (Cout, 1) f32."""
    C, L = a.shape
    ab = a.astype(jnp.bfloat16)
    z = jnp.zeros((C, 1), jnp.bfloat16)
    left = jnp.concatenate([z, ab[:, : L - 1]], axis=1)     # value at l is a[:, l-1]
    right = jnp.concatenate([ab[:, 1:], z], axis=1)         # value at l is a[:, l+1]
    stacked = jnp.concatenate([left, ab, right], axis=0)    # (3*C, L)
    return jnp.dot(w_mat, stacked, preferred_element_type=jnp.float32) + b_col


# ----------------------------------------------------------------------------
# Single fused ResidualBlock kernel (one grid step per batch element).
# ----------------------------------------------------------------------------
def _resblock_kernel(x_ref, t_ref,
                     g1m_ref, g1g_ref, g1b_ref, w1_ref, b1_ref,
                     ew_ref, eb_ref,
                     g2m_ref, g2g_ref, g2b_ref, w2_ref, b2_ref,
                     *rest, n1, n2, eps, has_sc):
    if has_sc:
        scw_ref, scb_ref, o_ref = rest
    else:
        (o_ref,) = rest

    x = x_ref[...].astype(jnp.float32)                                    # (Cin, L)

    # conv1 = GN(32, Cin) -> SiLU -> Conv1d(k=3, pad=1)
    a1 = _group_norm_silu(x, g1m_ref[...], g1g_ref[...], g1b_ref[...], n1, eps)
    h = _conv3_same(a1, w1_ref[...], b1_ref[...])                         # (Cout, L) f32

    # emb = SiLU -> Linear; broadcast-added over L (all fused, no HBM round trip)
    ts = _silu(t_ref[...].astype(jnp.float32)).astype(jnp.bfloat16)       # (Tch, 1)
    e = jnp.dot(ew_ref[...], ts, preferred_element_type=jnp.float32) + eb_ref[...]
    h = h + e                                                             # (Cout, L)

    # conv2 = GN(32, Cout) -> SiLU -> Dropout -> Conv1d(k=3, pad=1)
    # TODO(synk): nn.Dropout(p) is identity in eval mode; train-mode masking not implemented.
    a2 = _group_norm_silu(h, g2m_ref[...], g2g_ref[...], g2b_ref[...], n2, eps)
    h2 = _conv3_same(a2, w2_ref[...], b2_ref[...])                        # (Cout, L) f32

    # shortcut (1x1 conv or identity) + residual add, fused in the epilogue.
    if has_sc:
        sc = jnp.dot(scw_ref[...], x.astype(jnp.bfloat16),
                     preferred_element_type=jnp.float32) + scb_ref[...]
    else:
        sc = x
    o_ref[...] = (h2 + sc).astype(o_ref.dtype)


# ----------------------------------------------------------------------------
# Wrapper: one pallas_call for the whole block.
# ----------------------------------------------------------------------------
def residual_block(p, x, t, *, groups=32, eps=1e-5, out_dtype=jnp.float32):
    """x: [B, in_channels, L], t: [B, time_channels] -> [B, out_channels, L]."""
    B, Cin, L = x.shape
    Cout = p["conv1_w"].shape[0]
    Tch = t.shape[1]
    assert Cin % groups == 0 and Cout % groups == 0 and L >= 2
    has_sc = p["sc_w"] is not None
    if not has_sc:
        assert Cin == Cout

    def gmask(C):
        gid = jnp.arange(C) // (C // groups)
        return (gid[:, None] == gid[None, :]).astype(jnp.float32)         # (C, C)

    # Conv weights reordered so the three taps form a single K = 3*C contraction;
    # all MXU weight operands pre-cast to bf16 (halves their DMA bytes).
    w1m = jnp.transpose(p["conv1_w"], (0, 2, 1)).reshape(Cout, 3 * Cin).astype(jnp.bfloat16)
    w2m = jnp.transpose(p["conv2_w"], (0, 2, 1)).reshape(Cout, 3 * Cout).astype(jnp.bfloat16)
    ewm = p["emb_w"].astype(jnp.bfloat16)                                  # (Cout, Tch)

    sq = _squeezed
    args = [
        x,                                                                 # (B, Cin, L) f32
        t.reshape(B, Tch, 1),                                              # (B, Tch, 1) f32
        gmask(Cin),
        p["gn1_gamma"].reshape(Cin, 1),
        p["gn1_beta"].reshape(Cin, 1),
        w1m,
        p["conv1_b"].reshape(Cout, 1),
        ewm,
        p["emb_b"].reshape(Cout, 1),
        gmask(Cout),
        p["gn2_gamma"].reshape(Cout, 1),
        p["gn2_beta"].reshape(Cout, 1),
        w2m,
        p["conv2_b"].reshape(Cout, 1),
    ]
    in_specs = [
        pl.BlockSpec((sq(), Cin, L), lambda b: (b, 0, 0)),
        pl.BlockSpec((sq(), Tch, 1), lambda b: (b, 0, 0)),
        pl.BlockSpec((Cin, Cin), lambda b: (0, 0)),
        pl.BlockSpec((Cin, 1), lambda b: (0, 0)),
        pl.BlockSpec((Cin, 1), lambda b: (0, 0)),
        pl.BlockSpec((Cout, 3 * Cin), lambda b: (0, 0)),
        pl.BlockSpec((Cout, 1), lambda b: (0, 0)),
        pl.BlockSpec((Cout, Tch), lambda b: (0, 0)),
        pl.BlockSpec((Cout, 1), lambda b: (0, 0)),
        pl.BlockSpec((Cout, Cout), lambda b: (0, 0)),
        pl.BlockSpec((Cout, 1), lambda b: (0, 0)),
        pl.BlockSpec((Cout, 1), lambda b: (0, 0)),
        pl.BlockSpec((Cout, 3 * Cout), lambda b: (0, 0)),
        pl.BlockSpec((Cout, 1), lambda b: (0, 0)),
    ]
    if has_sc:
        args += [p["sc_w"].reshape(Cout, Cin).astype(jnp.bfloat16),
                 p["sc_b"].reshape(Cout, 1)]
        in_specs += [pl.BlockSpec((Cout, Cin), lambda b: (0, 0)),
                     pl.BlockSpec((Cout, 1), lambda b: (0, 0))]

    kern = functools.partial(
        _resblock_kernel,
        n1=(Cin // groups) * L, n2=(Cout // groups) * L, eps=eps, has_sc=has_sc)

    # TODO(synk): for very long L (e.g. >=4k on v7x's 64 MiB VMEM), tile the L axis
    # with 1-element conv halos and two-pass (tile-then-combine) GN statistics, and
    # add a second 'parallel' grid axis so both v7x TensorCores get work at small B.
    # TODO(synk): when L < 128 the (Cout, L) stores are masked vst; for production
    # sizes keep L a multiple of 128 (lane-dense output).
    return pl.pallas_call(
        kern,
        out_shape=jax.ShapeDtypeStruct((B, Cout, L), out_dtype),
        grid=(B,),
        in_specs=in_specs,
        out_specs=pl.BlockSpec((sq(), Cout, L), lambda b: (b, 0, 0)),
        compiler_params=pltpu.CompilerParams(
            dimension_semantics=("parallel",),
            vmem_limit_bytes=48 * 1024 * 1024),
    )(*args)


# ----------------------------------------------------------------------------
# Parameter init (mirrors nn.Conv1d / nn.Linear / nn.GroupNorm defaults).
# ----------------------------------------------------------------------------
def init_residual_block(key, in_channels, out_channels, time_channels):
    ks = jax.random.split(key, 8)

    def unif(k, shape, fan_in):
        bound = 1.0 / math.sqrt(fan_in)
        return jax.random.uniform(k, shape, jnp.float32, -bound, bound)

    p = {
        "gn1_gamma": jnp.ones((in_channels,), jnp.float32),
        "gn1_beta": jnp.zeros((in_channels,), jnp.float32),
        "conv1_w": unif(ks[0], (out_channels, in_channels, 3), in_channels * 3),
        "conv1_b": unif(ks[1], (out_channels,), in_channels * 3),
        "emb_w": unif(ks[2], (out_channels, time_channels), time_channels),
        "emb_b": unif(ks[3], (out_channels,), time_channels),
        "gn2_gamma": jnp.ones((out_channels,), jnp.float32),
        "gn2_beta": jnp.zeros((out_channels,), jnp.float32),
        "conv2_w": unif(ks[4], (out_channels, out_channels, 3), out_channels * 3),
        "conv2_b": unif(ks[5], (out_channels,), out_channels * 3),
        "sc_w": None,
        "sc_b": None,
    }
    if in_channels != out_channels:
        p["sc_w"] = unif(ks[6], (out_channels, in_channels, 1), in_channels)
        p["sc_b"] = unif(ks[7], (out_channels,), in_channels)
    return p


# ----------------------------------------------------------------------------
# Pure-JAX f32 reference (correctness tolerance check).
# ----------------------------------------------------------------------------
def _ref_silu(v):
    return v * jax.nn.sigmoid(v)


def _ref_group_norm(x, gamma, beta, groups=32, eps=1e-5):
    B, C, L = x.shape
    xg = x.reshape(B, groups, -1)
    m = jnp.mean(xg, axis=2, keepdims=True)
    v = jnp.mean(jnp.square(xg - m), axis=2, keepdims=True)
    y = ((xg - m) / jnp.sqrt(v + eps)).reshape(B, C, L)
    return y * gamma[None, :, None] + beta[None, :, None]


def _ref_conv1d(x, w, b, pad):
    if pad:
        x = jnp.pad(x, ((0, 0), (0, 0), (pad, pad)))
    K = w.shape[2]
    L = x.shape[2] - K + 1
    acc = 0.0
    for k in range(K):
        acc = acc + jnp.einsum("oi,bil->bol", w[:, :, k], x[:, :, k:k + L],
                               precision=lax.Precision.HIGHEST)
    return acc + b[None, :, None]


def _ref_residual_block(p, x, t):
    h = _ref_silu(_ref_group_norm(x, p["gn1_gamma"], p["gn1_beta"]))
    h = _ref_conv1d(h, p["conv1_w"], p["conv1_b"], 1)
    e = jnp.einsum("bi,oi->bo", _ref_silu(t), p["emb_w"],
                   precision=lax.Precision.HIGHEST) + p["emb_b"]
    h = h + e[:, :, None]
    h = _ref_silu(_ref_group_norm(h, p["gn2_gamma"], p["gn2_beta"]))
    h = _ref_conv1d(h, p["conv2_w"], p["conv2_b"], 1)
    if p["sc_w"] is not None:
        sc = jnp.einsum("oi,bil->bol", p["sc_w"][:, :, 0], x,
                        precision=lax.Precision.HIGHEST) + p["sc_b"][None, :, None]
    else:
        sc = x
    return h + sc


# ----------------------------------------------------------------------------
if __name__ == "__main__":
    B, L = 2, 16
    in_ch, out_ch, time_ch = 32, 64, 128       # channels multiples of 32 (GroupNorm(32))

    root = jax.random.PRNGKey(0)
    kx, kt, kp1, kp2, kx2 = jax.random.split(root, 5)
    x = jax.random.normal(kx, (B, in_ch, L), jnp.float32)
    t = jax.random.normal(kt, (B, time_ch), jnp.float32)

    # Case 1: in_channels != out_channels -> fused 1x1-conv shortcut.
    params = init_residual_block(kp1, in_ch, out_ch, time_ch)
    fwd = jax.jit(lambda a, b: residual_block(params, a, b))
    out = jax.block_until_ready(fwd(x, t))
    assert out.shape == (B, out_ch, L), out.shape
    assert bool(jnp.all(jnp.isfinite(out)))
    ref = _ref_residual_block(params, x, t)
    assert bool(jnp.allclose(out, ref, atol=8e-2, rtol=8e-2)), \
        float(jnp.max(jnp.abs(out - ref)))

    # Case 2: in_channels == out_channels -> fused identity shortcut.
    params2 = init_residual_block(kp2, out_ch, out_ch, time_ch)
    x2 = jax.random.normal(kx2, (B, out_ch, L), jnp.float32)
    fwd2 = jax.jit(lambda a, b: residual_block(params2, a, b))
    out2 = jax.block_until_ready(fwd2(x2, t))
    assert out2.shape == (B, out_ch, L), out2.shape
    assert bool(jnp.all(jnp.isfinite(out2)))
    ref2 = _ref_residual_block(params2, x2, t)
    assert bool(jnp.allclose(out2, ref2, atol=8e-2, rtol=8e-2)), \
        float(jnp.max(jnp.abs(out2 - ref2)))

    print("KERNEL_OK")
</pallas_src>

<mosaic_0001>
module attributes {stable_mosaic.version = 11 : i64} {
  func.func @_resblock_kernel(%arg0: i32, %arg1: memref<1x32x16xf32, #tpu.memory_space<vmem>>, %arg2: memref<1x128x1xf32, #tpu.memory_space<vmem>>, %arg3: memref<32x32xf32, #tpu.memory_space<vmem>>, %arg4: memref<32x1xf32, #tpu.memory_space<vmem>>, %arg5: memref<32x1xf32, #tpu.memory_space<vmem>>, %arg6: memref<64x96xbf16, #tpu.memory_space<vmem>>, %arg7: memref<64x1xf32, #tpu.memory_space<vmem>>, %arg8: memref<64x128xbf16, #tpu.memory_space<vmem>>, %arg9: memref<64x1xf32, #tpu.memory_space<vmem>>, %arg10: memref<64x64xf32, #tpu.memory_space<vmem>>, %arg11: memref<64x1xf32, #tpu.memory_space<vmem>>, %arg12: memref<64x1xf32, #tpu.memory_space<vmem>>, %arg13: memref<64x192xbf16, #tpu.memory_space<vmem>>, %arg14: memref<64x1xf32, #tpu.memory_space<vmem>>, %arg15: memref<64x32xbf16, #tpu.memory_space<vmem>>, %arg16: memref<64x1xf32, #tpu.memory_space<vmem>>, %arg17: memref<1x64x16xf32, #tpu.memory_space<vmem>>) attributes {dimension_semantics = [#tpu.dimension_semantics<parallel>], iteration_bounds = array<i64: 2>, scalar_prefetch = 0 : i64, scratch_operands = 0 : i64, tpu.core_type = #tpu.core_type<tc>, window_params = [{transform_indices = @transform_0, window_bounds = array<i64: 1, 32, 16>}, {transform_indices = @transform_1, window_bounds = array<i64: 1, 128, 1>}, {pipeline_mode = #tpu.pipeline_mode<synchronous>, transform_indices = @transform_2, window_bounds = array<i64: 32, 32>}, {pipeline_mode = #tpu.pipeline_mode<synchronous>, transform_indices = @transform_3, window_bounds = array<i64: 32, 1>}, {pipeline_mode = #tpu.pipeline_mode<synchronous>, transform_indices = @transform_4, window_bounds = array<i64: 32, 1>}, {pipeline_mode = #tpu.pipeline_mode<synchronous>, transform_indices = @transform_5, window_bounds = array<i64: 64, 96>}, {pipeline_mode = #tpu.pipeline_mode<synchronous>, transform_indices = @transform_6, window_bounds = array<i64: 64, 1>}, {pipeline_mode = #tpu.pipeline_mode<synchronous>, transform_indices = @transform_7, window_bounds = array<i64: 64, 128>}, {pipeline_mode = #tpu.pipeline_mode<synchronous>, transform_indices = @transform_8, window_bounds = array<i64: 64, 1>}, {pipeline_mode = #tpu.pipeline_mode<synchronous>, transform_indices = @transform_9, window_bounds = array<i64: 64, 64>}, {pipeline_mode = #tpu.pipeline_mode<synchronous>, transform_indices = @transform_10, window_bounds = array<i64: 64, 1>}, {pipeline_mode = #tpu.pipeline_mode<synchronous>, transform_indices = @transform_11, window_bounds = array<i64: 64, 1>}, {pipeline_mode = #tpu.pipeline_mode<synchronous>, transform_indices = @transform_12, window_bounds = array<i64: 64, 192>}, {pipeline_mode = #tpu.pipeline_mode<synchronous>, transform_indices = @transform_13, window_bounds = array<i64: 64, 1>}, {pipeline_mode = #tpu.pipeline_mode<synchronous>, transform_indices = @transform_14, window_bounds = array<i64: 64, 32>}, {pipeline_mode = #tpu.pipeline_mode<synchronous>, transform_indices = @transform_15, window_bounds = array<i64: 64, 1>}, {transform_indices = @transform_16, window_bounds = array<i64: 1, 64, 16>}]} {
    %c0 = arith.constant 0 : index
    %c0_0 = arith.constant 0 : index
    %c0_1 = arith.constant 0 : index
    %0 = vector.load %arg1[%c0, %c0_0, %c0_1] : memref<1x32x16xf32, #tpu.memory_space<vmem>>, vector<1x32x16xf32>
    %1 = vector.shape_cast %0 : vector<1x32x16xf32> to vector<32x16xf32>
    %c0_2 = arith.constant 0 : index
    %c0_3 = arith.constant 0 : index
    %2 = vector.load %arg3[%c0_2, %c0_3] : memref<32x32xf32, #tpu.memory_space<vmem>>, vector<32x32xf32>
    %c0_4 = arith.constant 0 : index
    %c0_5 = arith.constant 0 : index
    %3 = vector.load %arg4[%c0_4, %c0_5] : memref<32x1xf32, #tpu.memory_space<vmem>>, vector<32x1xf32>
    %c0_6 = arith.constant 0 : index
    %c0_7 = arith.constant 0 : index
    %4 = vector.load %arg5[%c0_6, %c0_7] : memref<32x1xf32, #tpu.memory_space<vmem>>, vector<32x1xf32>
    %cst = arith.constant dense<0.000000e+00> : vector<32xf32>
    %5 = vector.multi_reduction <add>, %1, %cst [1] : vector<32x16xf32> to vector<32xf32>
    %6 = vector.shape_cast %5 : vector<32xf32> to vector<32x1xf32>
    %cst_8 = arith.constant dense<0.000000e+00> : vector<32x1xf32>
    %7 = tpu.matmul %2, %6, %cst_8 {dimension_numbers = #tpu.dot_dimension_numbers<[1], [0], [0], [1], [0, 0, 1, 1], [], []>} : vector<32x32xf32>, vector<32x1xf32>, vector<32x1xf32> -> vector<32x1xf32>
    %cst_9 = arith.constant 1.600000e+01 : f32
    %8 = vector.broadcast %cst_9 : f32 to vector<32x1xf32>
    %9 = arith.divf %7, %8 : vector<32x1xf32>
    %10 = vector.broadcast %9 : vector<32x1xf32> to vector<32x16xf32>
    %11 = arith.subf %1, %10 : vector<32x16xf32>
    %12 = arith.mulf %11, %11 : vector<32x16xf32>
    %cst_10 = arith.constant dense<0.000000e+00> : vector<32xf32>
    %13 = vector.multi_reduction <add>, %12, %cst_10 [1] : vector<32x16xf32> to vector<32xf32>
    %14 = vector.shape_cast %13 : vector<32xf32> to vector<32x1xf32>
    %cst_11 = arith.constant dense<0.000000e+00> : vector<32x1xf32>
    %15 = tpu.matmul %2, %14, %cst_11 {dimension_numbers = #tpu.dot_dimension_numbers<[1], [0], [0], [1], [0, 0, 1, 1], [], []>} : vector<32x32xf32>, vector<32x1xf32>, vector<32x1xf32> -> vector<32x1xf32>
    %cst_12 = arith.constant 1.600000e+01 : f32
    %16 = vector.broadcast %cst_12 : f32 to vector<32x1xf32>
    %17 = arith.divf %15, %16 : vector<32x1xf32>
    %cst_13 = arith.constant 9.99999974E-6 : f32
    %18 = vector.broadcast %cst_13 : f32 to vector<32x1xf32>
    %19 = arith.addf %17, %18 : vector<32x1xf32>
    %20 = math.rsqrt %19 : vector<32x1xf32>
    %21 = vector.broadcast %20 : vector<32x1xf32> to vector<32x16xf32>
    %22 = arith.mulf %11, %21 : vector<32x16xf32>
    %23 = vector.broadcast %3 : vector<32x1xf32> to vector<32x16xf32>
    %24 = arith.mulf %22, %23 : vector<32x16xf32>
    %25 = vector.broadcast %4 : vector<32x1xf32> to vector<32x16xf32>
    %26 = arith.addf %24, %25 : vector<32x16xf32>
    %27 = arith.negf %26 : vector<32x16xf32>
    %28 = math.exp %27 : vector<32x16xf32>
    %cst_14 = arith.constant 1.000000e+00 : f32
    %29 = vector.broadcast %cst_14 : f32 to vector<32x16xf32>
    %30 = arith.addf %29, %28 : vector<32x16xf32>
    %31 = arith.divf %29, %30 : vector<32x16xf32>
    %32 = arith.mulf %26, %31 : vector<32x16xf32>
    %c0_15 = arith.constant 0 : index
    %c0_16 = arith.constant 0 : index
    %33 = vector.load %arg6[%c0_15, %c0_16] : memref<64x96xbf16, #tpu.memory_space<vmem>>, vector<64x96xbf16>
    %c0_17 = arith.constant 0 : index
    %c0_18 = arith.constant 0 : index
    %34 = vector.load %arg7[%c0_17, %c0_18] : memref<64x1xf32, #tpu.memory_space<vmem>>, vector<64x1xf32>
    %35 = arith.truncf %32 : vector<32x16xf32> to vector<32x16xbf16>
    %cst_19 = arith.constant 0.000000e+00 : bf16
    %36 = vector.broadcast %cst_19 : bf16 to vector<32x1xbf16>
    %37 = vector.extract_strided_slice %35 {offsets = [0, 0], sizes = [32, 15], strides = [1, 1]} : vector<32x16xbf16> to vector<32x15xbf16>
    %38 = tpu.concatenate %36, %37 in 1 : vector<32x1xbf16>, vector<32x15xbf16> -> vector<32x16xbf16>
    %39 = vector.extract_strided_slice %35 {offsets = [0, 1], sizes = [32, 15], strides = [1, 1]} : vector<32x16xbf16> to vector<32x15xbf16>
    %40 = tpu.concatenate %39, %36 in 1 : vector<32x15xbf16>, vector<32x1xbf16> -> vector<32x16xbf16>
    %41 = tpu.concatenate %38, %35, %40 in 0 : vector<32x16xbf16>, vector<32x16xbf16>, vector<32x16xbf16> -> vector<96x16xbf16>
    %cst_20 = arith.constant dense<0.000000e+00> : vector<64x16xf32>
    %42 = tpu.matmul %33, %41, %cst_20 {dimension_numbers = #tpu.dot_dimension_numbers<[1], [0], [0], [1], [0, 0, 1, 1], [], []>} : vector<64x96xbf16>, vector<96x16xbf16>, vector<64x16xf32> -> vector<64x16xf32>
    %43 = vector.broadcast %34 : vector<64x1xf32> to vector<64x16xf32>
    %44 = arith.addf %42, %43 : vector<64x16xf32>
    %c0_21 = arith.constant 0 : index
    %c0_22 = arith.constant 0 : index
    %c0_23 = arith.constant 0 : index
    %45 = vector.load %arg2[%c0_21, %c0_22, %c0_23] : memref<1x128x1xf32, #tpu.memory_space<vmem>>, vector<1x128x1xf32>
    %46 = vector.shape_cast %45 : vector<1x128x1xf32> to vector<128x1xf32>
    %47 = arith.negf %46 : vector<128x1xf32>
    %48 = math.exp %47 : vector<128x1xf32>
    %cst_24 = arith.constant 1.000000e+00 : f32
    %49 = vector.broadcast %cst_24 : f32 to vector<128x1xf32>
    %50 = arith.addf %49, %48 : vector<128x1xf32>
    %51 = arith.divf %49, %50 : vector<128x1xf32>
    %52 = arith.mulf %46, %51 : vector<128x1xf32>
    %53 = arith.truncf %52 : vector<128x1xf32> to vector<128x1xbf16>
    %c0_25 = arith.constant 0 : index
    %c0_26 = arith.constant 0 : index
    %54 = vector.load %arg8[%c0_25, %c0_26] : memref<64x128xbf16, #tpu.memory_space<vmem>>, vector<64x128xbf16>
    %cst_27 = arith.constant dense<0.000000e+00> : vector<64x1xf32>
    %55 = tpu.matmul %54, %53, %cst_27 {dimension_numbers = #tpu.dot_dimension_numbers<[1], [0], [0], [1], [0, 0, 1, 1], [], []>} : vector<64x128xbf16>, vector<128x1xbf16>, vector<64x1xf32> -> vector<64x1xf32>
    %c0_28 = arith.constant 0 : index
    %c0_29 = arith.constant 0 : index
    %56 = vector.load %arg9[%c0_28, %c0_29] : memref<64x1xf32, #tpu.memory_space<vmem>>, vector<64x1xf32>
    %57 = arith.addf %55, %56 : vector<64x1xf32>
    %58 = vector.broadcast %57 : vector<64x1xf32> to vector<64x16xf32>
    %59 = arith.addf %44, %58 : vector<64x16xf32>
    %c0_30 = arith.constant 0 : index
    %c0_31 = arith.constant 0 : index
    %60 = vector.load %arg10[%c0_30, %c0_31] : memref<64x64xf32, #tpu.memory_space<vmem>>, vector<64x64xf32>
    %c0_32 = arith.constant 0 : index
    %c0_33 = arith.constant 0 : index
    %61 = vector.load %arg11[%c0_32, %c0_33] : memref<64x1xf32, #tpu.memory_space<vmem>>, vector<64x1xf32>
    %c0_34 = arith.constant 0 : index
    %c0_35 = arith.constant 0 : index
    %62 = vector.load %arg12[%c0_34, %c0_35] : memref<64x1xf32, #tpu.memory_space<vmem>>, vector<64x1xf32>
    %cst_36 = arith.constant dense<0.000000e+00> : vector<64xf32>
    %63 = vector.multi_reduction <add>, %59, %cst_36 [1] : vector<64x16xf32> to vector<64xf32>
    %64 = vector.shape_cast %63 : vector<64xf32> to vector<64x1xf32>
    %cst_37 = arith.constant dense<0.000000e+00> : vector<64x1xf32>
    %65 = tpu.matmul %60, %64, %cst_37 {dimension_numbers = #tpu.dot_dimension_numbers<[1], [0], [0], [1], [0, 0, 1, 1], [], []>} : vector<64x64xf32>, vector<64x1xf32>, vector<64x1xf32> -> vector<64x1xf32>
    %cst_38 = arith.constant 3.200000e+01 : f32
    %66 = vector.broadcast %cst_38 : f32 to vector<64x1xf32>
    %67 = arith.divf %65, %66 : vector<64x1xf32>
    %68 = vector.broadcast %67 : vector<64x1xf32> to vector<64x16xf32>
    %69 = arith.subf %59, %68 : vector<64x16xf32>
    %70 = arith.mulf %69, %69 : vector<64x16xf32>
    %cst_39 = arith.constant dense<0.000000e+00> : vector<64xf32>
    %71 = vector.multi_reduction <add>, %70, %cst_39 [1] : vector<64x16xf32> to vector<64xf32>
    %72 = vector.shape_cast %71 : vector<64xf32> to vector<64x1xf32>
    %cst_40 = arith.constant dense<0.000000e+00> : vector<64x1xf32>
    %73 = tpu.matmul %60, %72, %cst_40 {dimension_numbers = #tpu.dot_dimension_numbers<[1], [0], [0], [1], [0, 0, 1, 1], [], []>} : vector<64x64xf32>, vector<64x1xf32>, vector<64x1xf32> -> vector<64x1xf32>
    %cst_41 = arith.constant 3.200000e+01 : f32
    %74 = vector.broadcast %cst_41 : f32 to vector<64x1xf32>
    %75 = arith.divf %73, %74 : vector<64x1xf32>
    %cst_42 = arith.constant 9.99999974E-6 : f32
    %76 = vector.broadcast %cst_42 : f32 to vector<64x1xf32>
    %77 = arith.addf %75, %76 : vector<64x1xf32>
    %78 = math.rsqrt %77 : vector<64x1xf32>
    %79 = vector.broadcast %78 : vector<64x1xf32> to vector<64x16xf32>
    %80 = arith.mulf %69, %79 : vector<64x16xf32>
    %81 = vector.broadcast %61 : vector<64x1xf32> to vector<64x16xf32>
    %82 = arith.mulf %80, %81 : vector<64x16xf32>
    %83 = vector.broadcast %62 : vector<64x1xf32> to vector<64x16xf32>
    %84 = arith.addf %82, %83 : vector<64x16xf32>
    %85 = arith.negf %84 : vector<64x16xf32>
    %86 = math.exp %85 : vector<64x16xf32>
    %cst_43 = arith.constant 1.000000e+00 : f32
    %87 = vector.broadcast %cst_43 : f32 to vector<64x16xf32>
    %88 = arith.addf %87, %86 : vector<64x16xf32>
    %89 = arith.divf %87, %88 : vector<64x16xf32>
    %90 = arith.mulf %84, %89 : vector<64x16xf32>
    %c0_44 = arith.constant 0 : index
    %c0_45 = arith.constant 0 : index
    %91 = vector.load %arg13[%c0_44, %c0_45] : memref<64x192xbf16, #tpu.memory_space<vmem>>, vector<64x192xbf16>
    %c0_46 = arith.constant 0 : index
    %c0_47 = arith.constant 0 : index
    %92 = vector.load %arg14[%c0_46, %c0_47] : memref<64x1xf32, #tpu.memory_space<vmem>>, vector<64x1xf32>
    %93 = arith.truncf %90 : vector<64x16xf32> to vector<64x16xbf16>
    %cst_48 = arith.constant 0.000000e+00 : bf16
    %94 = vector.broadcast %cst_48 : bf16 to vector<64x1xbf16>
    %95 = vector.extract_strided_slice %93 {offsets = [0, 0], sizes = [64, 15], strides = [1, 1]} : vector<64x16xbf16> to vector<64x15xbf16>
    %96 = tpu.concatenate %94, %95 in 1 : vector<64x1xbf16>, vector<64x15xbf16> -> vector<64x16xbf16>
    %97 = vector.extract_strided_slice %93 {offsets = [0, 1], sizes = [64, 15], strides = [1, 1]} : vector<64x16xbf16> to vector<64x15xbf16>
    %98 = tpu.concatenate %97, %94 in 1 : vector<64x15xbf16>, vector<64x1xbf16> -> vector<64x16xbf16>
    %99 = tpu.concatenate %96, %93, %98 in 0 : vector<64x16xbf16>, vector<64x16xbf16>, vector<64x16xbf16> -> vector<192x16xbf16>
    %cst_49 = arith.constant dense<0.000000e+00> : vector<64x16xf32>
    %100 = tpu.matmul %91, %99, %cst_49 {dimension_numbers = #tpu.dot_dimension_numbers<[1], [0], [0], [1], [0, 0, 1, 1], [], []>} : vector<64x192xbf16>, vector<192x16xbf16>, vector<64x16xf32> -> vector<64x16xf32>
    %101 = vector.broadcast %92 : vector<64x1xf32> to vector<64x16xf32>
    %102 = arith.addf %100, %101 : vector<64x16xf32>
    %c0_50 = arith.constant 0 : index
    %c0_51 = arith.constant 0 : index
    %103 = vector.load %arg15[%c0_50, %c0_51] : memref<64x32xbf16, #tpu.memory_space<vmem>>, vector<64x32xbf16>
    %104 = arith.truncf %1 : vector<32x16xf32> to vector<32x16xbf16>
    %cst_52 = arith.constant dense<0.000000e+00> : vector<64x16xf32>
    %105 = tpu.matmul %103, %104, %cst_52 {dimension_numbers = #tpu.dot_dimension_numbers<[1], [0], [0], [1], [0, 0, 1, 1], [], []>} : vector<64x32xbf16>, vector<32x16xbf16>, vector<64x16xf32> -> vector<64x16xf32>
    %c0_53 = arith.constant 0 : index
    %c0_54 = arith.constant 0 : index
    %106 = vector.load %arg16[%c0_53, %c0_54] : memref<64x1xf32, #tpu.memory_space<vmem>>, vector<64x1xf32>
    %107 = vector.broadcast %106 : vector<64x1xf32> to vector<64x16xf32>
    %108 = arith.addf %105, %107 : vector<64x16xf32>
    %109 = arith.addf %102, %108 : vector<64x16xf32>
    %c0_55 = arith.constant 0 : index
    %c0_56 = arith.constant 0 : index
    %c0_57 = arith.constant 0 : index
    %110 = vector.load %arg17[%c0_55, %c0_56, %c0_57] : memref<1x64x16xf32, #tpu.memory_space<vmem>>, vector<1x64x16xf32>
    %111 = vector.shape_cast %110 : vector<1x64x16xf32> to vector<64x16xf32>
    %112 = vector.shape_cast %109 : vector<64x16xf32> to vector<1x64x16xf32>
    tpu.vector_store %arg17[%c0_55, %c0_56, %c0_57], %112 {strides = array<i32>} : memref<1x64x16xf32, #tpu.memory_space<vmem>>, vector<1x64x16xf32>,
    return
  }
  func.func @transform_0(%arg0: i32) -> (i32, i32, i32) {
    %c0_i32 = arith.constant 0 : i32
    %c0_i32_0 = arith.constant 0 : i32
    %c0_i32_1 = arith.constant 0 : i32
    return %arg0, %c0_i32, %c0_i32_0 : i32, i32, i32
  }
  func.func @transform_1(%arg0: i32) -> (i32, i32, i32) {
    %c0_i32 = arith.constant 0 : i32
    %c0_i32_0 = arith.constant 0 : i32
    %c0_i32_1 = arith.constant 0 : i32
    return %arg0, %c0_i32, %c0_i32_0 : i32, i32, i32
  }
  func.func @transform_2(%arg0: i32) -> (i32, i32) {
    %c0_i32 = arith.constant 0 : i32
    %c0_i32_0 = arith.constant 0 : i32
    %c0_i32_1 = arith.constant 0 : i32
    return %c0_i32, %c0_i32_0 : i32, i32
  }
  func.func @transform_3(%arg0: i32) -> (i32, i32) {
    %c0_i32 = arith.constant 0 : i32
    %c0_i32_0 = arith.constant 0 : i32
    %c0_i32_1 = arith.constant 0 : i32
    return %c0_i32, %c0_i32_0 : i32, i32
  }
  func.func @transform_4(%arg0: i32) -> (i32, i32) {
    %c0_i32 = arith.constant 0 : i32
    %c0_i32_0 = arith.constant 0 : i32
    %c0_i32_1 = arith.constant 0 : i32
    return %c0_i32, %c0_i32_0 : i32, i32
  }
  func.func @transform_5(%arg0: i32) -> (i32, i32) {
    %c0_i32 = arith.constant 0 : i32
    %c0_i32_0 = arith.constant 0 : i32
    %c0_i32_1 = arith.constant 0 : i32
    return %c0_i32, %c0_i32_0 : i32, i32
  }
  func.func @transform_6(%arg0: i32) -> (i32, i32) {
    %c0_i32 = arith.constant 0 : i32
    %c0_i32_0 = arith.constant 0 : i32
    %c0_i32_1 = arith.constant 0 : i32
    return %c0_i32, %c0_i32_0 : i32, i32
  }
  func.func @transform_7(%arg0: i32) -> (i32, i32) {
    %c0_i32 = arith.constant 0 : i32
    %c0_i32_0 = arith.constant 0 : i32
    %c0_i32_1 = arith.constant 0 : i32
    return %c0_i32, %c0_i32_0 : i32, i32
  }
  func.func @transform_8(%arg0: i32) -> (i32, i32) {
    %c0_i32 = arith.constant 0 : i32
    %c0_i32_0 = arith.constant 0 : i32
    %c0_i32_1 = arith.constant 0 : i32
    return %c0_i32, %c0_i32_0 : i32, i32
  }
  func.func @transform_9(%arg0: i32) -> (i32, i32) {
    %c0_i32 = arith.constant 0 : i32
    %c0_i32_0 = arith.constant 0 : i32
    %c0_i32_1 = arith.constant 0 : i32
    return %c0_i32, %c0_i32_0 : i32, i32
  }
  func.func @transform_10(%arg0: i32) -> (i32, i32) {
    %c0_i32 = arith.constant 0 : i32
    %c0_i32_0 = arith.constant 0 : i32
    %c0_i32_1 = arith.constant 0 : i32
    return %c0_i32, %c0_i32_0 : i32, i32
  }
  func.func @transform_11(%arg0: i32) -> (i32, i32) {
    %c0_i32 = arith.constant 0 : i32
    %c0_i32_0 = arith.constant 0 : i32
    %c0_i32_1 = arith.constant 0 : i32
    return %c0_i32, %c0_i32_0 : i32, i32
  }
  func.func @transform_12(%arg0: i32) -> (i32, i32) {
    %c0_i32 = arith.constant 0 : i32
    %c0_i32_0 = arith.constant 0 : i32
    %c0_i32_1 = arith.constant 0 : i32
    return %c0_i32, %c0_i32_0 : i32, i32
  }
  func.func @transform_13(%arg0: i32) -> (i32, i32) {
    %c0_i32 = arith.constant 0 : i32
    %c0_i32_0 = arith.constant 0 : i32
    %c0_i32_1 = arith.constant 0 : i32
    return %c0_i32, %c0_i32_0 : i32, i32
  }
  func.func @transform_14(%arg0: i32) -> (i32, i32) {
    %c0_i32 = arith.constant 0 : i32
    %c0_i32_0 = arith.constant 0 : i32
    %c0_i32_1 = arith.constant 0 : i32
    return %c0_i32, %c0_i32_0 : i32, i32
  }
  func.func @transform_15(%arg0: i32) -> (i32, i32) {
    %c0_i32 = arith.constant 0 : i32
    %c0_i32_0 = arith.constant 0 : i32
    %c0_i32_1 = arith.constant 0 : i32
    return %c0_i32, %c0_i32_0 : i32, i32
  }
  func.func @transform_16(%arg0: i32) -> (i32, i32, i32) {
    %c0_i32 = arith.constant 0 : i32
    %c0_i32_0 = arith.constant 0 : i32
    %c0_i32_1 = arith.constant 0 : i32
    return %arg0, %c0_i32, %c0_i32_0 : i32, i32, i32
  }
}

</mosaic_0001>

<llo_original>
// kernel: _lambda_.1
$region0: #{_lambda_.1}
  #allocation0 [shape = 'u32[]', space=smem, size = 0x4, offset = 0x4, fixed_abs, tag = 'smem constant byte address 0x4 - core index']
  #allocation1 [shape = 'u32[144,128]{1,0:T(1,128)}', space=vmem, size = 0x12000, scoped, tag = 'internal scratch']
  %s0 = inlined_call_operand.vmem [shape: f32[2,32,16], index: 0, kind: input, shape index: {}]
  %s1 = inlined_call_operand.vmem [shape: f32[2,128,1], index: 1, kind: input, shape index: {}]
  %s2 = inlined_call_operand.vmem [shape: f32[32,32], index: 2, kind: input, shape index: {}]
  %s3 = inlined_call_operand.vmem [shape: f32[32,1], index: 3, kind: input, shape index: {}]
  %s4 = inlined_call_operand.vmem [shape: f32[32,1], index: 4, kind: input, shape index: {}]
  %s5 = inlined_call_operand.vmem [shape: bf16[64,96], index: 5, kind: input, shape index: {}]
  %s6 = inlined_call_operand.vmem [shape: f32[64,1], index: 6, kind: input, shape index: {}]
  %s7 = inlined_call_operand.vmem [shape: bf16[64,128], index: 7, kind: input, shape index: {}]
  %s8 = inlined_call_operand.vmem [shape: f32[64,1], index: 8, kind: input, shape index: {}]
  %s9 = inlined_call_operand.vmem [shape: f32[64,64], index: 9, kind: input, shape index: {}]
  %s10 = inlined_call_operand.vmem [shape: f32[64,1], index: 10, kind: input, shape index: {}]
  %s11 = inlined_call_operand.vmem [shape: f32[64,1], index: 11, kind: input, shape index: {}]
  %s12 = inlined_call_operand.vmem [shape: bf16[64,192], index: 12, kind: input, shape index: {}]
  %s13 = inlined_call_operand.vmem [shape: f32[64,1], index: 13, kind: input, shape index: {}]
  %s14 = inlined_call_operand.vmem [shape: bf16[64,32], index: 14, kind: input, shape index: {}]
  %s15 = inlined_call_operand.vmem [shape: f32[64,1], index: 15, kind: input, shape index: {}]
  %s16 = inlined_call_operand.vmem [shape: f32[2,64,16], index: 16, kind: output, shape index: {}]
  %s17 = sld [smem:[#allocation0]]
  $region97: #{_lambda_.1} parent=0
    _
  %s19 = ssub.s32 1, %s17
  %s20 = scalar_select 0, %s19, %s17
  loop: start=0, step=1, limit=4
  $region2: #{_lambda_.1} parent=0 // loop_pre_header
    _
  $region3: #{_lambda_.1} parent=0 // loop_header
    %s22 = sphi 0, %s26
    %p23 = scmp.ge.s32.totalorder %s22, 4
    %s32 = sphi 0, %s34
    %s35 = sphi 0, %s32
    %s36 = sphi 0, %s35
    %s52 = sphi 0, %s36
    %s58 = sphi 0, %s60
    %s61 = sphi 0, %s58
    %s62 = sphi 0, %s61
    %s78 = sphi 0, %s62
    %s82 = sphi 0, %s82
    %s84 = sphi 0, %s82
    %s85 = sphi 0, %s84
    %s99 = sphi 0, %s85
    %s103 = sphi 0, %s103
    %s105 = sphi 0, %s103
    %s106 = sphi 0, %s105
    %s120 = sphi 0, %s106
    %s124 = sphi 0, %s124
    %s126 = sphi 0, %s124
    %s127 = sphi 0, %s126
    %s141 = sphi 0, %s127
    %s145 = sphi 0, %s145
    %s147 = sphi 0, %s145
    %s148 = sphi 0, %s147
    %s162 = sphi 0, %s148
    %s166 = sphi 0, %s166
    %s168 = sphi 0, %s166
    %s169 = sphi 0, %s168
    %s183 = sphi 0, %s169
    %s187 = sphi 0, %s187
    %s189 = sphi 0, %s187
    %s190 = sphi 0, %s189
    %s204 = sphi 0, %s190
    %s208 = sphi 0, %s208
    %s210 = sphi 0, %s208
    %s211 = sphi 0, %s210
    %s225 = sphi 0, %s211
    %s229 = sphi 0, %s229
    %s231 = sphi 0, %s229
    %s232 = sphi 0, %s231
    %s246 = sphi 0, %s232
    %s250 = sphi 0, %s250
    %s252 = sphi 0, %s250
    %s253 = sphi 0, %s252
    %s267 = sphi 0, %s253
    %s271 = sphi 0, %s271
    %s273 = sphi 0, %s271
    %s274 = sphi 0, %s273
    %s288 = sphi 0, %s274
    %s292 = sphi 0, %s292
    %s294 = sphi 0, %s292
    %s295 = sphi 0, %s294
    %s309 = sphi 0, %s295
    %s313 = sphi 0, %s313
    %s315 = sphi 0, %s313
    %s316 = sphi 0, %s315
    %s330 = sphi 0, %s316
    %s334 = sphi 0, %s334
    %s336 = sphi 0, %s334
    %s337 = sphi 0, %s336
    %s351 = sphi 0, %s337
    %s355 = sphi 0, %s355
    %s357 = sphi 0, %s355
    %s358 = sphi 0, %s357
    %s372 = sphi 0, %s358
    %s378 = sphi 0, %s380
    %s381 = sphi 0, %s378
    %s382 = sphi 0, %s381
    %s398 = sphi 0, %s382
  $region4: #{_lambda_.1} parent=0 // loop_header_branch
    %25 = sbr.rel (%p23) target = $region8
  $region5: #{_lambda_.1} parent=0 // loop_body
    %s27 = ssub.s32 %s22, 1
    %s28 = ssub.s32 %s22, 2
    %s29 = sadd.s32 %s22, 1
    %s30 = ssub.s32 %s22, %s29
    %p31 = scmp.eq.s32.totalorder %s30, 0
    %s33 = sadd.s32 %s32, 1
    %s34 = scalar_select %p31, %s32, %s33
    %p37 = pneg %p31
    %p38 = scmp.eq.s32.totalorder %s22, 1
    %p39 = por %p37, %p38
    %p40 = scmp.ne.s32.totalorder %s32, %s35
    %p41 = scmp.eq.s32.totalorder %s22, 0
    %p42 = por %p40, %p41
    %p43 = scmp.ne.s32.totalorder %s32, %s35
    %p44 = scmp.eq.s32.totalorder %s27, 1
    %p45 = por %p43, %p44
    %p46 = scmp.ne.s32.totalorder %s35, %s36
    %p47 = scmp.eq.s32.totalorder %s27, 0
    %p48 = por %p46, %p47
    %p49 = scmp.ne.s32.totalorder %s35, %s36
    %p50 = scmp.eq.s32.totalorder %s28, 1
    %p51 = por %p49, %p50
    %p53 = scmp.ne.s32.totalorder %s36, %s52
    %p54 = scmp.eq.s32.totalorder %s28, 0
    %p55 = por %p53, %p54
    %s56 = ssub.s32 %s22, %s29
    %p57 = scmp.eq.s32.totalorder %s56, 0
    %s59 = sadd.s32 %s58, 1
    %s60 = scalar_select %p57, %s58, %s59
    %p63 = pneg %p57
    %p64 = scmp.eq.s32.totalorder %s22, 1
    %p65 = por %p63, %p64
    %p66 = scmp.ne.s32.totalorder %s58, %s61
    %p67 = scmp.eq.s32.totalorder %s22, 0
    %p68 = por %p66, %p67
    %p69 = scmp.ne.s32.totalorder %s58, %s61
    %p70 = scmp.eq.s32.totalorder %s27, 1
    %p71 = por %p69, %p70
    %p72 = scmp.ne.s32.totalorder %s61, %s62
    %p73 = scmp.eq.s32.totalorder %s27, 0
    %p74 = por %p72, %p73
    %p75 = scmp.ne.s32.totalorder %s61, %s62
    %p76 = scmp.eq.s32.totalorder %s28, 1
    %p77 = por %p75, %p76
    %p79 = scmp.ne.s32.totalorder %s62, %s78
    %p80 = scmp.eq.s32.totalorder %s28, 0
    %p81 = por %p79, %p80
    %s83 = sadd.s32 %s82, 1
    %p86 = scmp.eq.s32.totalorder %s22, 1
    %p87 = scmp.ne.s32.totalorder %s82, %s84
    %p88 = scmp.eq.s32.totalorder %s22, 0
    %p89 = por %p87, %p88
    %p90 = scmp.ne.s32.totalorder %s82, %s84
    %p91 = scmp.eq.s32.totalorder %s27, 1
    %p92 = por %p90, %p91
    %p93 = scmp.ne.s32.totalorder %s84, %s85
    %p94 = scmp.eq.s32.totalorder %s27, 0
    %p95 = por %p93, %p94
    %p96 = scmp.ne.s32.totalorder %s84, %s85
    %p97 = scmp.eq.s32.totalorder %s28, 1
    %p98 = por %p96, %p97
    %p100 = scmp.ne.s32.totalorder %s85, %s99
    %p101 = scmp.eq.s32.totalorder %s28, 0
    %p102 = por %p100, %p101
    %s104 = sadd.s32 %s103, 1
    %p107 = scmp.eq.s32.totalorder %s22, 1
    %p108 = scmp.ne.s32.totalorder %s103, %s105
    %p109 = scmp.eq.s32.totalorder %s22, 0
    %p110 = por %p108, %p109
    %p111 = scmp.ne.s32.totalorder %s103, %s105
    %p112 = scmp.eq.s32.totalorder %s27, 1
    %p113 = por %p111, %p112
    %p114 = scmp.ne.s32.totalorder %s105, %s106
    %p115 = scmp.eq.s32.totalorder %s27, 0
    %p116 = por %p114, %p115
    %p117 = scmp.ne.s32.totalorder %s105, %s106
    %p118 = scmp.eq.s32.totalorder %s28, 1
    %p119 = por %p117, %p118
    %p121 = scmp.ne.s32.totalorder %s106, %s120
    %p122 = scmp.eq.s32.totalorder %s28, 0
    %p123 = por %p121, %p122
    %s125 = sadd.s32 %s124, 1
    %p128 = scmp.eq.s32.totalorder %s22, 1
    %p129 = scmp.ne.s32.totalorder %s124, %s126
    %p130 = scmp.eq.s32.totalorder %s22, 0
    %p131 = por %p129, %p130
    %p132 = scmp.ne.s32.totalorder %s124, %s126
    %p133 = scmp.eq.s32.totalorder %s27, 1
    %p134 = por %p132, %p133
    %p135 = scmp.ne.s32.totalorder %s126, %s127
    %p136 = scmp.eq.s32.totalorder %s27, 0
    %p137 = por %p135, %p136
    %p138 = scmp.ne.s32.totalorder %s126, %s127
    %p139 = scmp.eq.s32.totalorder %s28, 1
    %p140 = por %p138, %p139
    %p142 = scmp.ne.s32.totalorder %s127, %s141
    %p143 = scmp.eq.s32.totalorder %s28, 0
    %p144 = por %p142, %p143
    %s146 = sadd.s32 %s145, 1
    %p149 = scmp.eq.s32.totalorder %s22, 1
    %p150 = scmp.ne.s32.totalorder %s145, %s147
    %p151 = scmp.eq.s32.totalorder %s22, 0
    %p152 = por %p150, %p151
    %p153 = scmp.ne.s32.totalorder %s145, %s147
    %p154 = scmp.eq.s32.totalorder %s27, 1
    %p155 = por %p153, %p154
    %p156 = scmp.ne.s32.totalorder %s147, %s148
    %p157 = scmp.eq.s32.totalorder %s27, 0
    %p158 = por %p156, %p157
    %p159 = scmp.ne.s32.totalorder %s147, %s148
    %p160 = scmp.eq.s32.totalorder %s28, 1
    %p161 = por %p159, %p160
    %p163 = scmp.ne.s32.totalorder %s148, %s162
    %p164 = scmp.eq.s32.totalorder %s28, 0
    %p165 = por %p163, %p164
    %s167 = sadd.s32 %s166, 1
    %p170 = scmp.eq.s32.totalorder %s22, 1
    %p171 = scmp.ne.s32.totalorder %s166, %s168
    %p172 = scmp.eq.s32.totalorder %s22, 0
    %p173 = por %p171, %p172
    %p174 = scmp.ne.s32.totalorder %s166, %s168
    %p175 = scmp.eq.s32.totalorder %s27, 1
    %p176 = por %p174, %p175
    %p177 = scmp.ne.s32.totalorder %s168, %s169
    %p178 = scmp.eq.s32.totalorder %s27, 0
    %p179 = por %p177, %p178
    %p180 = scmp.ne.s32.totalorder %s168, %s169
    %p181 = scmp.eq.s32.totalorder %s28, 1
    %p182 = por %p180, %p181
    %p184 = scmp.ne.s32.totalorder %s169, %s183
    %p185 = scmp.eq.s32.totalorder %s28, 0
    %p186 = por %p184, %p185
    %s188 = sadd.s32 %s187, 1
    %p191 = scmp.eq.s32.totalorder %s22, 1
    %p192 = scmp.ne.s32.totalorder %s187, %s189
    %p193 = scmp.eq.s32.totalorder %s22, 0
    %p194 = por %p192, %p193
    %p195 = scmp.ne.s32.totalorder %s187, %s189
    %p196 = scmp.eq.s32.totalorder %s27, 1
    %p197 = por %p195, %p196
    %p198 = scmp.ne.s32.totalorder %s189, %s190
    %p199 = scmp.eq.s32.totalorder %s27, 0
    %p200 = por %p198, %p199
    %p201 = scmp.ne.s32.totalorder %s189, %s190
    %p202 = scmp.eq.s32.totalorder %s28, 1
    %p203 = por %p201, %p202
    %p205 = scmp.ne.s32.totalorder %s190, %s204
    %p206 = scmp.eq.s32.totalorder %s28, 0
    %p207 = por %p205, %p206
    %s209 = sadd.s32 %s208, 1
    %p212 = scmp.eq.s32.totalorder %s22, 1
    %p213 = scmp.ne.s32.totalorder %s208, %s210
    %p214 = scmp.eq.s32.totalorder %s22, 0
    %p215 = por %p213, %p214
    %p216 = scmp.ne.s32.totalorder %s208, %s210
    %p217 = scmp.eq.s32.totalorder %s27, 1
    %p218 = por %p216, %p217
    %p219 = scmp.ne.s32.totalorder %s210, %s211
    %p220 = scmp.eq.s32.totalorder %s27, 0
    %p221 = por %p219, %p220
    %p222 = scmp.ne.s32.totalorder %s210, %s211
    %p223 = scmp.eq.s32.totalorder %s28, 1
    %p224 = por %p222, %p223
    %p226 = scmp.ne.s32.totalorder %s211, %s225
    %p227 = scmp.eq.s32.totalorder %s28, 0
    %p228 = por %p226, %p227
    %s230 = sadd.s32 %s229, 1
    %p233 = scmp.eq.s32.totalorder %s22, 1
    %p234 = scmp.ne.s32.totalorder %s229, %s231
    %p235 = scmp.eq.s32.totalorder %s22, 0
    %p236 = por %p234, %p235
    %p237 = scmp.ne.s32.totalorder %s229, %s231
    %p238 = scmp.eq.s32.totalorder %s27, 1
    %p239 = por %p237, %p238
    %p240 = scmp.ne.s32.totalorder %s231, %s232
    %p241 = scmp.eq.s32.totalorder %s27, 0
    %p242 = por %p240, %p241
    %p243 = scmp.ne.s32.totalorder %s231, %s232
    %p244 = scmp.eq.s32.totalorder %s28, 1
    %p245 = por %p243, %p244
    %p247 = scmp.ne.s32.totalorder %s232, %s246
    %p248 = scmp.eq.s32.totalorder %s28, 0
    %p249 = por %p247, %p248
    %s251 = sadd.s32 %s250, 1
    %p254 = scmp.eq.s32.totalorder %s22, 1
    %p255 = scmp.ne.s32.totalorder %s250, %s252
    %p256 = scmp.eq.s32.totalorder %s22, 0
    %p257 = por %p255, %p256
    %p258 = scmp.ne.s32.totalorder %s250, %s252
    %p259 = scmp.eq.s32.totalorder %s27, 1
    %p260 = por %p258, %p259
    %p261 = scmp.ne.s32.totalorder %s252, %s253
    %p262 = scmp.eq.s32.totalorder %s27, 0
    %p263 = por %p261, %p262
    %p264 = scmp.ne.s32.totalorder %s252, %s253
    %p265 = scmp.eq.s32.totalorder %s28, 1
    %p266 = por %p264, %p265
    %p268 = scmp.ne.s32.totalorder %s253, %s267
    %p269 = scmp.eq.s32.totalorder %s28, 0
    %p270 = por %p268, %p269
    %s272 = sadd.s32 %s271, 1
    %p275 = scmp.eq.s32.totalorder %s22, 1
    %p276 = scmp.ne.s32.totalorder %s271, %s273
    %p277 = scmp.eq.s32.totalorder %s22, 0
    %p278 = por %p276, %p277
    %p279 = scmp.ne.s32.totalorder %s271, %s273
    %p280 = scmp.eq.s32.totalorder %s27, 1
    %p281 = por %p279, %p280
    %p282 = scmp.ne.s32.totalorder %s273, %s274
    %p283 = scmp.eq.s32.totalorder %s27, 0
    %p284 = por %p282, %p283
    %p285 = scmp.ne.s32.totalorder %s273, %s274
    %p286 = scmp.eq.s32.totalorder %s28, 1
    %p287 = por %p285, %p286
    %p289 = scmp.ne.s32.totalorder %s274, %s288
    %p290 = scmp.eq.s32.totalorder %s28, 0
    %p291 = por %p289, %p290
    %s293 = sadd.s32 %s292, 1
    %p296 = scmp.eq.s32.totalorder %s22, 1
    %p297 = scmp.ne.s32.totalorder %s292, %s294
    %p298 = scmp.eq.s32.totalorder %s22, 0
    %p299 = por %p297, %p298
    %p300 = scmp.ne.s32.totalorder %s292, %s294
    %p301 = scmp.eq.s32.totalorder %s27, 1
    %p302 = por %p300, %p301
    %p303 = scmp.ne.s32.totalorder %s294, %s295
    %p304 = scmp.eq.s32.totalorder %s27, 0
    %p305 = por %p303, %p304
    %p306 = scmp.ne.s32.totalorder %s294, %s295
    %p307 = scmp.eq.s32.totalorder %s28, 1
    %p308 = por %p306, %p307
    %p310 = scmp.ne.s32.totalorder %s295, %s309
    %p311 = scmp.eq.s32.totalorder %s28, 0
    %p312 = por %p310, %p311
    %s314 = sadd.s32 %s313, 1
    %p317 = scmp.eq.s32.totalorder %s22, 1
    %p318 = scmp.ne.s32.totalorder %s313, %s315
    %p319 = scmp.eq.s32.totalorder %s22, 0
    %p320 = por %p318, %p319
    %p321 = scmp.ne.s32.totalorder %s313, %s315
    %p322 = scmp.eq.s32.totalorder %s27, 1
    %p323 = por %p321, %p322
    %p324 = scmp.ne.s32.totalorder %s315, %s316
    %p325 = scmp.eq.s32.totalorder %s27, 0
    %p326 = por %p324, %p325
    %p327 = scmp.ne.s32.totalorder %s315, %s316
    %p328 = scmp.eq.s32.totalorder %s28, 1
    %p329 = por %p327, %p328
    %p331 = scmp.ne.s32.totalorder %s316, %s330
    %p332 = scmp.eq.s32.totalorder %s28, 0
    %p333 = por %p331, %p332
    %s335 = sadd.s32 %s334, 1
    %p338 = scmp.eq.s32.totalorder %s22, 1
    %p339 = scmp.ne.s32.totalorder %s334, %s336
    %p340 = scmp.eq.s32.totalorder %s22, 0
    %p341 = por %p339, %p340
    %p342 = scmp.ne.s32.totalorder %s334, %s336
    %p343 = scmp.eq.s32.totalorder %s27, 1
    %p344 = por %p342, %p343
    %p345 = scmp.ne.s32.totalorder %s336, %s337
    %p346 = scmp.eq.s32.totalorder %s27, 0
    %p347 = por %p345, %p346
    %p348 = scmp.ne.s32.totalorder %s336, %s337
    %p349 = scmp.eq.s32.totalorder %s28, 1
    %p350 = por %p348, %p349
    %p352 = scmp.ne.s32.totalorder %s337, %s351
    %p353 = scmp.eq.s32.totalorder %s28, 0
    %p354 = por %p352, %p353
    %s356 = sadd.s32 %s355, 1
    %p359 = scmp.eq.s32.totalorder %s22, 1
    %p360 = scmp.ne.s32.totalorder %s355, %s357
    %p361 = scmp.eq.s32.totalorder %s22, 0
    %p362 = por %p360, %p361
    %p363 = scmp.ne.s32.totalorder %s355, %s357
    %p364 = scmp.eq.s32.totalorder %s27, 1
    %p365 = por %p363, %p364
    %p366 = scmp.ne.s32.totalorder %s357, %s358
    %p367 = scmp.eq.s32.totalorder %s27, 0
    %p368 = por %p366, %p367
    %p369 = scmp.ne.s32.totalorder %s357, %s358
    %p370 = scmp.eq.s32.totalorder %s28, 1
    %p371 = por %p369, %p370
    %p373 = scmp.ne.s32.totalorder %s358, %s372
    %p374 = scmp.eq.s32.totalorder %s28, 0
    %p375 = por %p373, %p374
    %s376 = ssub.s32 %s22, %s29
    %p377 = scmp.eq.s32.totalorder %s376, 0
    %s379 = sadd.s32 %s378, 1
    %s380 = scalar_select %p377, %s378, %s379
    %p383 = pneg %p377
    %p384 = scmp.eq.s32.totalorder %s22, 1
    %p385 = por %p383, %p384
    %p386 = scmp.ne.s32.totalorder %s378, %s381
    %p387 = scmp.eq.s32.totalorder %s22, 0
    %p388 = por %p386, %p387
    %p389 = scmp.ne.s32.totalorder %s378, %s381
    %p390 = scmp.eq.s32.totalorder %s27, 1
    %p391 = por %p389, %p390
    %p392 = scmp.ne.s32.totalorder %s381, %s382
    %p393 = scmp.eq.s32.totalorder %s27, 0
    %p394 = por %p392, %p393
    %p395 = scmp.ne.s32.totalorder %s381, %s382
    %p396 = scmp.eq.s32.totalorder %s28, 1
    %p397 = por %p395, %p396
    %p399 = scmp.ne.s32.totalorder %s382, %s398
    %p400 = scmp.eq.s32.totalorder %s28, 0
    %p401 = por %p399, %p400
    %p402 = scmp.le.s32.totalorder 1, %s22
    %p403 = scmp.lt.s32.totalorder %s22, 3
    %p404 = pnand %p402, %p403
    %p405 = pneg %p404
    // Predicated region
    $region9: #{_lambda_.1} parent=5 // pred_check
      _
    $region10: #{_lambda_.1} parent=5 // pred_check_branch
      %407 = sbr.rel (%p404) target = $region12
    $region11: #{_lambda_.1} parent=5 // pred_region
      %s408 = ssub.s32 %s22, 1
      // Predicated region
      $region13: #{_lambda_.1} parent=11 // pred_check
        %p409 = pneg %p95
      $region14: #{_lambda_.1} parent=11 // pred_check_branch
        %411 = sbr.rel (%p409) target = $region16
      $region15: #{_lambda_.1} parent=11 // pred_region
        _
      $region16: #{_lambda_.1} parent=11 // pred_fallthru
        _
      // Predicated region
      $region17: #{_lambda_.1} parent=11 // pred_check
        %p412 = pneg %p116
      $region18: #{_lambda_.1} parent=11 // pred_check_branch
        %414 = sbr.rel (%p412) target = $region20
      $region19: #{_lambda_.1} parent=11 // pred_region
        _
      $region20: #{_lambda_.1} parent=11 // pred_fallthru
        _
      // Predicated region
      $region21: #{_lambda_.1} parent=11 // pred_check
        %p415 = pneg %p137
      $region22: #{_lambda_.1} parent=11 // pred_check_branch
        %417 = sbr.rel (%p415) target = $region24
      $region23: #{_lambda_.1} parent=11 // pred_region
        _
      $region24: #{_lambda_.1} parent=11 // pred_fallthru
        _
      // Predicated region
      $region25: #{_lambda_.1} parent=11 // pred_check
        %p418 = pneg %p158
      $region26: #{_lambda_.1} parent=11 // pred_check_branch
        %420 = sbr.rel (%p418) target = $region28
      $region27: #{_lambda_.1} parent=11 // pred_region
        _
      $region28: #{_lambda_.1} parent=11 // pred_fallthru
        _
      // Predicated region
      $region29: #{_lambda_.1} parent=11 // pred_check
        %p421 = pneg %p179
      $region30: #{_lambda_.1} parent=11 // pred_check_branch
        %423 = sbr.rel (%p421) target = $region32
      $region31: #{_lambda_.1} parent=11 // pred_region
        _
      $region32: #{_lambda_.1} parent=11 // pred_fallthru
        _
      // Predicated region
      $region33: #{_lambda_.1} parent=11 // pred_check
        %p424 = pneg %p200
      $region34: #{_lambda_.1} parent=11 // pred_check_branch
        %426 = sbr.rel (%p424) target = $region36
      $region35: #{_lambda_.1} parent=11 // pred_region
        _
      $region36: #{_lambda_.1} parent=11 // pred_fallthru
        _
      // Predicated region
      $region37: #{_lambda_.1} parent=11 // pred_check
        %p427 = pneg %p221
      $region38: #{_lambda_.1} parent=11 // pred_check_branch
        %429 = sbr.rel (%p427) target = $region40
      $region39: #{_lambda_.1} parent=11 // pred_region
        _
      $region40: #{_lambda_.1} parent=11 // pred_fallthru
        _
      // Predicated region
      $region41: #{_lambda_.1} parent=11 // pred_check
        %p430 = pneg %p242
      $region42: #{_lambda_.1} parent=11 // pred_check_branch
        %432 = sbr.rel (%p430) target = $region44
      $region43: #{_lambda_.1} parent=11 // pred_region
        _
      $region44: #{_lambda_.1} parent=11 // pred_fallthru
        _
      // Predicated region
      $region45: #{_lambda_.1} parent=11 // pred_check
        %p433 = pneg %p263
      $region46: #{_lambda_.1} parent=11 // pred_check_branch
        %435 = sbr.rel (%p433) target = $region48
      $region47: #{_lambda_.1} parent=11 // pred_region
        _
      $region48: #{_lambda_.1} parent=11 // pred_fallthru
        _
      // Predicated region
      $region49: #{_lambda_.1} parent=11 // pred_check
        %p436 = pneg %p284
      $region50: #{_lambda_.1} parent=11 // pred_check_branch
        %438 = sbr.rel (%p436) target = $region52
      $region51: #{_lambda_.1} parent=11 // pred_region
        _
      $region52: #{_lambda_.1} parent=11 // pred_fallthru
        _
      // Predicated region
      $region53: #{_lambda_.1} parent=11 // pred_check
        %p439 = pneg %p305
      $region54: #{_lambda_.1} parent=11 // pred_check_branch
        %441 = sbr.rel (%p439) target = $region56
      $region55: #{_lambda_.1} parent=11 // pred_region
        _
      $region56: #{_lambda_.1} parent=11 // pred_fallthru
        _
      // Predicated region
      $region57: #{_lambda_.1} parent=11 // pred_check
        %p442 = pneg %p326
      $region58: #{_lambda_.1} parent=11 // pred_check_branch
        %444 = sbr.rel (%p442) target = $region60
      $region59: #{_lambda_.1} parent=11 // pred_region
        _
      $region60: #{_lambda_.1} parent=11 // pred_fallthru
        _
      // Predicated region
      $region61: #{_lambda_.1} parent=11 // pred_check
        %p445 = pneg %p347
      $region62: #{_lambda_.1} parent=11 // pred_check_branch
        %447 = sbr.rel (%p445) target = $region64
      $region63: #{_lambda_.1} parent=11 // pred_region
        _
      $region64: #{_lambda_.1} parent=11 // pred_fallthru
        _
      // Predicated region
      $region65: #{_lambda_.1} parent=11 // pred_check
        %p448 = pneg %p368
      $region66: #{_lambda_.1} parent=11 // pred_check_branch
        %450 = sbr.rel (%p448) target = $region68
      $region67: #{_lambda_.1} parent=11 // pred_region
        _
      $region68: #{_lambda_.1} parent=11 // pred_fallthru
        _
    $region12: #{_lambda_.1} parent=5 // pred_fallthru
      _
    %p451 = scmp.lt.s32.totalorder %s22, 2
    // Predicated region
    $region69: #{_lambda_.1} parent=5 // pred_check
      %p452 = pneg %p451
    $region70: #{_lambda_.1} parent=5 // pred_check_branch
      %454 = sbr.rel (%p452) target = $region72
    $region71: #{_lambda_.1} parent=5 // pred_region
      // Predicated region
      $region73: #{_lambda_.1} parent=71 // pred_check
        %p455 = pneg %p42
      $region74: #{_lambda_.1} parent=71 // pred_check_branch
        %457 = sbr.rel (%p455) target = $region76
      $region75: #{_lambda_.1} parent=71 // pred_region
        %p458 = scmp.lt.s32.totalorder %s22, 1
        %s459 = scalar_select %p458, %s22, 1
        %s460 = smul.addr %s459, 4
        %s461 = smul.addr %s460, 8
        %s462 = scalar_lea.vmem %s0, %s461
      $region76: #{_lambda_.1} parent=71 // pred_fallthru
        _
      // Predicated region
      $region77: #{_lambda_.1} parent=71 // pred_check
        %p463 = pneg %p68
      $region78: #{_lambda_.1} parent=71 // pred_check_branch
        %465 = sbr.rel (%p463) target = $region80
      $region79: #{_lambda_.1} parent=71 // pred_region
        %p466 = scmp.lt.s32.totalorder %s22, 1
        %s467 = scalar_select %p466, %s22, 1
        %s468 = smul.addr %s467, 16
        %s469 = smul.addr %s468, 8
        %s470 = scalar_lea.vmem %s1, %s469
      $region80: #{_lambda_.1} parent=71 // pred_fallthru
        _
    $region72: #{_lambda_.1} parent=5 // pred_fallthru
      _
    %p471 = scmp.le.s32.totalorder 1, %s22
    %p472 = scmp.lt.s32.totalorder %s22, 3
    %p473 = pnand %p471, %p472
    %p474 = pneg %p473
    // Predicated region
    $region81: #{_lambda_.1} parent=5 // pred_check
      _
    $region82: #{_lambda_.1} parent=5 // pred_check_branch
      %476 = sbr.rel (%p473) target = $region84
    $region83: #{_lambda_.1} parent=5 // pred_region
      %s477 = ssub.s32 %s22, 1
      %p478 = scmp.lt.s32.totalorder %s27, 1
      %s479 = scalar_select %p478, %s27, 1
      %s480 = smul.addr %s479, 4
      %s481 = smul.addr %s480, 8
      %s482 = scalar_lea.vmem %s0, %s481
      %p483 = pneg %p48
      %p484 = pneg %p45
      %p485 = scmp.lt.s32.totalorder %s27, 1
      %s486 = scalar_select %p485, %s27, 1
      %s487 = smul.addr %s486, 16
      %s488 = smul.addr %s487, 8
      %s489 = scalar_lea.vmem %s1, %s488
      %p490 = pneg %p74
      %p491 = pneg %p71
      %p492 = pneg %p95
      %p493 = pneg %p92
      %p494 = pneg %p116
      %p495 = pneg %p113
      %p496 = pneg %p137
      %p497 = pneg %p134
      %p498 = pneg %p158
      %p499 = pneg %p155
      %p500 = pneg %p179
      %p501 = pneg %p176
      %p502 = pneg %p200
      %p503 = pneg %p197
      %p504 = pneg %p221
      %p505 = pneg %p218
      %p506 = pneg %p242
      %p507 = pneg %p239
      %p508 = pneg %p263
      %p509 = pneg %p260
      %p510 = pneg %p284
      %p511 = pneg %p281
      %p512 = pneg %p305
      %p513 = pneg %p302
      %p514 = pneg %p326
      %p515 = pneg %p323
      %p516 = pneg %p347
      %p517 = pneg %p344
      %p518 = pneg %p368
      %p519 = pneg %p365
      %p520 = pneg %p394
      %p521 = pneg %p391
      %p522 = scmp.lt.s32.totalorder %s27, 1
      %s523 = scalar_select %p522, %s27, 1
      %s524 = smul.addr %s523, 8
      %s525 = smul.addr %s524, 8
      %s526 = scalar_lea.vmem %s16, %s525
      %p527 = scmp.lt.s32.totalorder %s27, 1
      %s528 = scalar_select %p527, %s27, 1
      %s529 = smul.addr %s528, 4
      %s530 = smul.addr %s529, 8
      %s531 = scalar_lea.vmem %s0, %s530
      %p532 = scmp.lt.s32.totalorder %s27, 1
      %s533 = scalar_select %p532, %s27, 1
      %s534 = smul.addr %s533, 16
      %s535 = smul.addr %s534, 8
      %s536 = scalar_lea.vmem %s1, %s535
      %p537 = scmp.lt.s32.totalorder %s27, 1
      %s538 = scalar_select %p537, %s27, 1
      %s539 = smul.addr %s538, 8
      %s540 = smul.addr %s539, 8
      %s541 = scalar_lea.vmem %s16, %s540
      %v543 = vld [vmem:[%s531] sm:$0xff]
      %v544 = vld [vmem:[%s531 + $0x8] sm:$0xff]
      %v545 = vld [vmem:[%s531 + $0x10] sm:$0xff]
      %v546 = vld [vmem:[%s531 + $0x18] sm:$0xff]
      %v547 = vld [vmem:[%s2] sm:$0xff]
      %v548 = vld [vmem:[%s2 + $0x8] sm:$0xff]
      %v549 = vld [vmem:[%s2 + $0x10] sm:$0xff]
      %v550 = vld [vmem:[%s2 + $0x18] sm:$0xff]
      %v551 = vld [vmem:[%s3] sm:$0xff]
      %v552 = vld [vmem:[%s3 + $0x8] sm:$0xff]
      %v553 = vld [vmem:[%s3 + $0x10] sm:$0xff]
      %v554 = vld [vmem:[%s3 + $0x18] sm:$0xff]
      %v555 = vld [vmem:[%s4] sm:$0xff]
      %v556 = vld [vmem:[%s4 + $0x8] sm:$0xff]
      %v557 = vld [vmem:[%s4 + $0x10] sm:$0xff]
      %v558 = vld [vmem:[%s4 + $0x18] sm:$0xff]
      %vm559 = vcmask 130048
      %v560 = vsel %vm559, %v543, 0.0
      %561 = vadd.xlane.f32.xlu0 %v560
      %v562 = vpop.xlane.xlu0 %561
      %v563 = vsel %vm559, %v544, 0.0
      %564 = vadd.xlane.f32.xlu0 %v563
      %v565 = vpop.xlane.xlu0 %564
      %v566 = vsel %vm559, %v545, 0.0
      %567 = vadd.xlane.f32.xlu0 %v566
      %v568 = vpop.xlane.xlu0 %567
      %v569 = vsel %vm559, %v546, 0.0
      %570 = vadd.xlane.f32.xlu0 %v569
      %v571 = vpop.xlane.xlu0 %570
      %vm572 = vcmask 261120
      %v574 = vsel %vm572, %v547, 0
      %v577 = vsel %vm572, %v548, 0
      %v580 = vsel %vm572, %v549, 0
      %v583 = vsel %vm572, %v550, 0
      %585 = vmatprep.subr.mxu0 0.0
      %586 = vmatpush1.msra.mxu0 0.0
      %587 = vmatprep.subr.mxu0 0.0
      %588 = vmatpush1.msra.mxu0 0.0
      %589 = vmatprep.subr.mxu0 0.0
      %590 = vmatpush1.msra.mxu0 0.0
      %591 = vmatprep.subr.mxu0 0.0
      %592 = vmatpush1.msra.mxu0 0.0
      %593 = vmatprep.subr.mxu0 0.0
      %594 = vmatpush1.msra.mxu0 0.0
      %595 = vmatprep.subr.mxu0 0.0
      %596 = vmatpush1.msra.mxu0 0.0
      %597 = vmatprep.subr.mxu0 0.0
      %598 = vmatpush1.msra.mxu0 0.0
      %599 = vmatprep.subr.mxu0 0.0
      %600 = vmatpush1.msra.mxu0 0.0
      %601 = vmatprep.subr.mxu0 0.0
      %602 = vmatpush1.msra.mxu0 0.0
      %603 = vmatprep.subr.mxu0 0.0
      %604 = vmatpush1.msra.mxu0 0.0
      %605 = vmatprep.subr.mxu0 0.0
      %606 = vmatpush1.msra.mxu0 0.0
      %607 = vmatprep.subr.mxu0 0.0
      %608 = vmatpush1.msra.mxu0 0.0
      %609 = vmatprep.subr.mxu0 0.0
      %610 = vmatpush1.msra.mxu0 %v571
      %611 = vmatprep.subr.mxu0 0.0
      %612 = vmatpush1.msra.mxu0 %v568
      %613 = vmatprep.subr.mxu0 0.0
      %614 = vmatpush1.msra.mxu0 %v565
      %615 = vmatprep.subr.mxu0 0.0
      %616 = vmatpush1.msra.mxu0 %v562
      %617 = vmatprep.subr.mxu0 0.0
      %618 = vmatpush2.msra.mxu0 0.0
      %619 = vmatprep.subr.mxu0 0.0
      %620 = vmatpush2.msra.mxu0 0.0
      %621 = vmatprep.subr.mxu0 0.0
      %622 = vmatpush2.msra.mxu0 0.0
      %623 = vmatprep.subr.mxu0 0.0
      %624 = vmatpush2.msra.mxu0 0.0
      %625 = vmatprep.subr.mxu0 0.0
      %626 = vmatpush2.msra.mxu0 0.0
      %627 = vmatprep.subr.mxu0 0.0
      %628 = vmatpush2.msra.mxu0 0.0
      %629 = vmatprep.subr.mxu0 0.0
      %630 = vmatpush2.msra.mxu0 0.0
      %631 = vmatprep.subr.mxu0 0.0
      %632 = vmatpush2.msra.mxu0 0.0
      %633 = vmatprep.subr.mxu0 0.0
      %634 = vmatpush2.msra.mxu0 0.0
      %635 = vmatprep.subr.mxu0 0.0
      %636 = vmatpush2.msra.mxu0 0.0
      %637 = vmatprep.subr.mxu0 0.0
      %638 = vmatpush2.msra.mxu0 0.0
      %639 = vmatprep.subr.mxu0 0.0
      %640 = vmatpush2.msra.mxu0 0.0
      %641 = vmatprep.subr.mxu0 0.0
      %642 = vmatpush2.msra.mxu0 0.0
      %643 = vmatprep.subr.mxu0 0.0
      %644 = vmatpush2.msra.mxu0 0.0
      %645 = vmatprep.subr.mxu0 0.0
      %646 = vmatpush2.msra.mxu0 0.0
      %647 = vmatprep.subr.mxu0 0.0
      %648 = vmatpush2.msra.mxu0 0.0
      %649 = vmatprep.mubr.f32.mxu0 0.0
      %650 = vmatmul.mubr.f32.gmra.mxu0 %v574
      %v651 = vpop.f32.mrf.mxu0
      %v652 = vadd.f32 0.0, %v651
      %v653 = vpop.f32.mrf.mxu0
      %654 = vmatprep.mubr.f32.mxu0 0.0
      %655 = vmatmul.mubr.f32.gmra.mxu0 %v577
      %v656 = vpop.f32.mrf.mxu0
      %v657 = vadd.f32 0.0, %v656
      %v658 = vpop.f32.mrf.mxu0
      %659 = vmatprep.mubr.f32.mxu0 0.0
      %660 = vmatmul.mubr.f32.gmra.mxu0 %v580
      %v661 = vpop.f32.mrf.mxu0
      %v662 = vadd.f32 0.0, %v661
      %v663 = vpop.f32.mrf.mxu0
      %664 = vmatprep.mubr.f32.mxu0 0.0
      %665 = vmatmul.mubr.f32.gmra.mxu0 %v583
      %v666 = vpop.f32.mrf.mxu0
      %v667 = vadd.f32 0.0, %v666
      %v668 = vpop.f32.mrf.mxu0
      %669 = vdwg.mxu0
      %v670 = vrcp.pop 16.0
      %v671 = vmul.f32 %v652, %v670
      %v672 = vmul.f32 %v657, %v670
      %v673 = vmul.f32 %v662, %v670
      %v674 = vmul.f32 %v667, %v670
      %676 = vset.pattern.permute.xlu0 0
      %677 = vperm.xlu0 %676, %v671
      %v678 = vpop.permute.xlu0 %677
      %681 = vset.pattern.permute.xlu0 0
      %682 = vperm.xlu0 %681, %v672
      %v683 = vpop.permute.xlu0 %682
      %686 = vset.pattern.permute.xlu0 0
      %687 = vperm.xlu0 %686, %v673
      %v688 = vpop.permute.xlu0 %687
      %691 = vset.pattern.permute.xlu0 0
      %692 = vperm.xlu0 %691, %v674
      %v693 = vpop.permute.xlu0 %692
      %v695 = vsub.f32 %v543, %v678
      %v696 = vsub.f32 %v544, %v683
      %v697 = vsub.f32 %v545, %v688
      %v698 = vsub.f32 %v546, %v693
      %v699 = vmul.f32 %v695, %v695
      %v700 = vmul.f32 %v696, %v696
      %v701 = vmul.f32 %v697, %v697
      %v702 = vmul.f32 %v698, %v698
      %v703 = vsel %vm559, %v699, 0.0
      %704 = vadd.xlane.f32.xlu0 %v703
      %v705 = vpop.xlane.xlu0 %704
      %v706 = vsel %vm559, %v700, 0.0
      %707 = vadd.xlane.f32.xlu0 %v706
      %v708 = vpop.xlane.xlu0 %707
      %v709 = vsel %vm559, %v701, 0.0
      %710 = vadd.xlane.f32.xlu0 %v709
      %v711 = vpop.xlane.xlu0 %710
      %v712 = vsel %vm559, %v702, 0.0
      %713 = vadd.xlane.f32.xlu0 %v712
      %v714 = vpop.xlane.xlu0 %713
      %715 = vmatprep.subr.mxu0 0.0
      %716 = vmatpush1.msra.mxu0 0.0
      %717 = vmatprep.subr.mxu0 0.0
      %718 = vmatpush1.msra.mxu0 0.0
      %719 = vmatprep.subr.mxu0 0.0
      %720 = vmatpush1.msra.mxu0 0.0
      %721 = vmatprep.subr.mxu0 0.0
      %722 = vmatpush1.msra.mxu0 0.0
      %723 = vmatprep.subr.mxu0 0.0
      %724 = vmatpush1.msra.mxu0 0.0
      %725 = vmatprep.subr.mxu0 0.0
      %726 = vmatpush1.msra.mxu0 0.0
      %727 = vmatprep.subr.mxu0 0.0
      %728 = vmatpush1.msra.mxu0 0.0
      %729 = vmatprep.subr.mxu0 0.0
      %730 = vmatpush1.msra.mxu0 0.0
      %731 = vmatprep.subr.mxu0 0.0
      %732 = vmatpush1.msra.mxu0 0.0
      %733 = vmatprep.subr.mxu0 0.0
      %734 = vmatpush1.msra.mxu0 0.0
      %735 = vmatprep.subr.mxu0 0.0
      %736 = vmatpush1.msra.mxu0 0.0
      %737 = vmatprep.subr.mxu0 0.0
      %738 = vmatpush1.msra.mxu0 0.0
      %739 = vmatprep.subr.mxu0 0.0
      %740 = vmatpush1.msra.mxu0 %v714
      %741 = vmatprep.subr.mxu0 0.0
      %742 = vmatpush1.msra.mxu0 %v711
      %743 = vmatprep.subr.mxu0 0.0
      %744 = vmatpush1.msra.mxu0 %v708
      %745 = vmatprep.subr.mxu0 0.0
      %746 = vmatpush1.msra.mxu0 %v705
      %747 = vmatprep.subr.mxu0 0.0
      %748 = vmatpush2.msra.mxu0 0.0
      %749 = vmatprep.subr.mxu0 0.0
      %750 = vmatpush2.msra.mxu0 0.0
      %751 = vmatprep.subr.mxu0 0.0
      %752 = vmatpush2.msra.mxu0 0.0
      %753 = vmatprep.subr.mxu0 0.0
      %754 = vmatpush2.msra.mxu0 0.0
      %755 = vmatprep.subr.mxu0 0.0
      %756 = vmatpush2.msra.mxu0 0.0
      %757 = vmatprep.subr.mxu0 0.0
      %758 = vmatpush2.msra.mxu0 0.0
      %759 = vmatprep.subr.mxu0 0.0
      %760 = vmatpush2.msra.mxu0 0.0
      %761 = vmatprep.subr.mxu0 0.0
      %762 = vmatpush2.msra.mxu0 0.0
      %763 = vmatprep.subr.mxu0 0.0
      %764 = vmatpush2.msra.mxu0 0.0
      %765 = vmatprep.subr.mxu0 0.0
      %766 = vmatpush2.msra.mxu0 0.0
      %767 = vmatprep.subr.mxu0 0.0
      %768 = vmatpush2.msra.mxu0 0.0
      %769 = vmatprep.subr.mxu0 0.0
      %770 = vmatpush2.msra.mxu0 0.0
      %771 = vmatprep.subr.mxu0 0.0
      %772 = vmatpush2.msra.mxu0 0.0
      %773 = vmatprep.subr.mxu0 0.0
      %774 = vmatpush2.msra.mxu0 0.0
      %775 = vmatprep.subr.mxu0 0.0
      %776 = vmatpush2.msra.mxu0 0.0
      %777 = vmatprep.subr.mxu0 0.0
      %778 = vmatpush2.msra.mxu0 0.0
      %779 = vmatprep.mubr.f32.mxu0 0.0
      %780 = vmatmul.mubr.f32.gmra.mxu0 %v574
      %v781 = vpop.f32.mrf.mxu0
      %v782 = vadd.f32 0.0, %v781
      %v783 = vpop.f32.mrf.mxu0
      %784 = vmatprep.mubr.f32.mxu0 0.0
      %785 = vmatmul.mubr.f32.gmra.mxu0 %v577
      %v786 = vpop.f32.mrf.mxu0
      %v787 = vadd.f32 0.0, %v786
      %v788 = vpop.f32.mrf.mxu0
      %789 = vmatprep.mubr.f32.mxu0 0.0
      %790 = vmatmul.mubr.f32.gmra.mxu0 %v580
      %v791 = vpop.f32.mrf.mxu0
      %v792 = vadd.f32 0.0, %v791
      %v793 = vpop.f32.mrf.mxu0
      %794 = vmatprep.mubr.f32.mxu0 0.0
      %795 = vmatmul.mubr.f32.gmra.mxu0 %v583
      %v796 = vpop.f32.mrf.mxu0
      %v797 = vadd.f32 0.0, %v796
      %v798 = vpop.f32.mrf.mxu0
      %799 = vdwg.mxu0
      %v800 = vmul.f32 %v782, %v670
      %v801 = vmul.f32 %v787, %v670
      %v802 = vmul.f32 %v792, %v670
      %v803 = vmul.f32 %v797, %v670
      %v804 = vadd.f32 %v800, 1e-05
      %v805 = vadd.f32 %v801, 1e-05
      %v806 = vadd.f32 %v802, 1e-05
      %v807 = vadd.f32 %v803, 1e-05
      %v808 = vrsqrt.pop %v804
      %v809 = vrsqrt.pop %v805
      %v810 = vrsqrt.pop %v806
      %v811 = vrsqrt.pop %v807
      %813 = vset.pattern.permute.xlu0 0
      %814 = vperm.xlu0 %813, %v808
      %v815 = vpop.permute.xlu0 %814
      %818 = vset.pattern.permute.xlu0 0
      %819 = vperm.xlu0 %818, %v809
      %v820 = vpop.permute.xlu0 %819
      %823 = vset.pattern.permute.xlu0 0
      %824 = vperm.xlu0 %823, %v810
      %v825 = vpop.permute.xlu0 %824
      %828 = vset.pattern.permute.xlu0 0
      %829 = vperm.xlu0 %828, %v811
      %v830 = vpop.permute.xlu0 %829
      %v832 = vmul.f32 %v695, %v815
      %v833 = vmul.f32 %v696, %v820
      %v834 = vmul.f32 %v697, %v825
      %v835 = vmul.f32 %v698, %v830
      %837 = vset.pattern.permute.xlu0 0
      %838 = vperm.xlu0 %837, %v551
      %v839 = vpop.permute.xlu0 %838
      %842 = vset.pattern.permute.xlu0 0
      %843 = vperm.xlu0 %842, %v552
      %v844 = vpop.permute.xlu0 %843
      %847 = vset.pattern.permute.xlu0 0
      %848 = vperm.xlu0 %847, %v553
      %v849 = vpop.permute.xlu0 %848
      %852 = vset.pattern.permute.xlu0 0
      %853 = vperm.xlu0 %852, %v554
      %v854 = vpop.permute.xlu0 %853
      %v856 = vmul.f32 %v832, %v839
      %v857 = vmul.f32 %v833, %v844
      %v858 = vmul.f32 %v834, %v849
      %v859 = vmul.f32 %v835, %v854
      %861 = vset.pattern.permute.xlu0 0
      %862 = vperm.xlu0 %861, %v555
      %v863 = vpop.permute.xlu0 %862
      %866 = vset.pattern.permute.xlu0 0
      %867 = vperm.xlu0 %866, %v556
      %v868 = vpop.permute.xlu0 %867
      %871 = vset.pattern.permute.xlu0 0
      %872 = vperm.xlu0 %871, %v557
      %v873 = vpop.permute.xlu0 %872
      %876 = vset.pattern.permute.xlu0 0
      %877 = vperm.xlu0 %876, %v558
      %v878 = vpop.permute.xlu0 %877
      %v880 = vadd.f32 %v856, %v863
      %v881 = vadd.f32 %v857, %v868
      %v882 = vadd.f32 %v858, %v873
      %v883 = vadd.f32 %v859, %v878
      %v884 = vxor.u32 %v880, 2147483648
      %v885 = vxor.u32 %v881, 2147483648
      %v886 = vxor.u32 %v882, 2147483648
      %v887 = vxor.u32 %v883, 2147483648
      %v888 = vmul.f32 %v884, 1.442695
      %v889 = vpow.pop %v888
      %v890 = vmul.f32 %v885, 1.442695
      %v891 = vpow.pop %v890
      %v892 = vmul.f32 %v886, 1.442695
      %v893 = vpow.pop %v892
      %v894 = vmul.f32 %v887, 1.442695
      %v895 = vpow.pop %v894
      %v896 = vadd.f32 %v889, 1.0
      %v897 = vadd.f32 %v891, 1.0
      %v898 = vadd.f32 %v893, 1.0
      %v899 = vadd.f32 %v895, 1.0
      %v900 = vrcp.pop %v896
      %v901 = vmul.f32 1.0, %v900
      %v902 = vrcp.pop %v897
      %v903 = vmul.f32 1.0, %v902
      %v904 = vrcp.pop %v898
      %v905 = vmul.f32 1.0, %v904
      %v906 = vrcp.pop %v899
      %v907 = vmul.f32 1.0, %v906
      %v908 = vmul.f32 %v880, %v901
      %v909 = vmul.f32 %v881, %v903
      %v910 = vmul.f32 %v882, %v905
      %v911 = vmul.f32 %v883, %v907
      %v912 = vld [vmem:[%s5] sm:$0xf]
      %v913 = vld [vmem:[%s5 + $0x4] sm:$0xf]
      %v914 = vld [vmem:[%s5 + $0x8] sm:$0xf]
      %v915 = vld [vmem:[%s5 + $0xc] sm:$0xf]
      %v916 = vld [vmem:[%s5 + $0x10] sm:$0xf]
      %v917 = vld [vmem:[%s5 + $0x14] sm:$0xf]
      %v918 = vld [vmem:[%s5 + $0x18] sm:$0xf]
      %v919 = vld [vmem:[%s5 + $0x1c] sm:$0xf]
      %v920 = vld [vmem:[%s6] sm:$0xff]
      %v921 = vld [vmem:[%s6 + $0x8] sm:$0xff]
      %v922 = vld [vmem:[%s6 + $0x10] sm:$0xff]
      %v923 = vld [vmem:[%s6 + $0x18] sm:$0xff]
      %v924 = vld [vmem:[%s6 + $0x20] sm:$0xff]
      %v925 = vld [vmem:[%s6 + $0x28] sm:$0xff]
      %v926 = vld [vmem:[%s6 + $0x30] sm:$0xff]
      %v927 = vld [vmem:[%s6 + $0x38] sm:$0xff]
      %v928 = vpack.c.bf16 %v909, %v908
      %v929 = vpack.c.bf16 %v911, %v910
      %932 = vrot.lane.b32.xlu0 %v928, 1
      %v933 = vpop.permute.xlu0 %932
      %934 = vrot.lane.b32.xlu0 %v929, 1
      %v935 = vpop.permute.xlu0 %934
      %vm936 = vcmask 7168
      %v939 = vsel %vm936, 0, %v933
      %v942 = vsel %vm936, 0, %v935
      %944 = vrot.lane.b32.xlu0 %v928, 127
      %v945 = vpop.permute.xlu0 %944
      %946 = vrot.lane.b32.xlu0 %v929, 127
      %v947 = vpop.permute.xlu0 %946
      %vm948 = vcmask 121856
      %v950 = vsel %vm948, %v945, 0
      %v953 = vsel %vm948, %v947, 0
      %956 = vset.pattern.permute.xlu0 0
      %957 = vperm.xlu0 %956, %v920
      %v958 = vpop.permute.xlu0 %957
      %961 = vset.pattern.permute.xlu0 0
      %962 = vperm.xlu0 %961, %v921
      %v963 = vpop.permute.xlu0 %962
      %966 = vset.pattern.permute.xlu0 0
      %967 = vperm.xlu0 %966, %v922
      %v968 = vpop.permute.xlu0 %967
      %971 = vset.pattern.permute.xlu0 0
      %972 = vperm.xlu0 %971, %v923
      %v973 = vpop.permute.xlu0 %972
      %976 = vset.pattern.permute.xlu0 0
      %977 = vperm.xlu0 %976, %v924
      %v978 = vpop.permute.xlu0 %977
      %981 = vset.pattern.permute.xlu0 0
      %982 = vperm.xlu0 %981, %v925
      %v983 = vpop.permute.xlu0 %982
      %986 = vset.pattern.permute.xlu0 0
      %987 = vperm.xlu0 %986, %v926
      %v988 = vpop.permute.xlu0 %987
      %991 = vset.pattern.permute.xlu0 0
      %992 = vperm.xlu0 %991, %v927
      %v993 = vpop.permute.xlu0 %992
      %v1003 = vunpack.c.l.b16 %v912
      %v1004 = vunpack.c.l.b16 %v913
      %v1005 = vunpack.c.l.b16 %v914
      %v1006 = vunpack.c.l.b16 %v915
      %v1007 = vunpack.c.l.b16 %v916
      %v1008 = vunpack.c.l.b16 %v917
      %v1009 = vunpack.c.l.b16 %v918
      %v1010 = vunpack.c.l.b16 %v919
      %v1011 = vpack.c.b16 %v1004, %v1003
      %v1012 = vpack.c.b16 %v1006, %v1005
      %v1013 = vpack.c.b16 %v1008, %v1007
      %v1014 = vpack.c.b16 %v1010, %v1009
      %vm1015 = vcmask 785408
      %v1017 = vsel %vm1015, %v1011, 0
      %v1020 = vsel %vm1015, %v1012, 0
      %v1023 = vsel %vm1015, %v1013, 0
      %v1026 = vsel %vm1015, %v1014, 0
      %1028 = vmatprep.subr.bf16.mxu0 0
      %1029 = vmatpush1.bf16.msra.mxu0 0
      %1030 = vmatprep.subr.bf16.mxu0 0
      %1031 = vmatpush1.bf16.msra.mxu0 0
      %1032 = vmatprep.subr.bf16.mxu0 0
      %1033 = vmatpush1.bf16.msra.mxu0 %v953
      %1034 = vmatprep.subr.bf16.mxu0 0
      %1035 = vmatpush1.bf16.msra.mxu0 %v950
      %1036 = vmatprep.subr.bf16.mxu0 0
      %1037 = vmatpush1.bf16.msra.mxu0 %v929
      %1038 = vmatprep.subr.bf16.mxu0 0
      %1039 = vmatpush1.bf16.msra.mxu0 %v928
      %1040 = vmatprep.subr.bf16.mxu0 0
      %1041 = vmatpush1.bf16.msra.mxu0 %v942
      %1042 = vmatprep.subr.bf16.mxu0 0
      %1043 = vmatpush1.bf16.msra.mxu0 %v939
      %1044 = vmatprep.subr.bf16.mxu0 0
      %1045 = vmatpush2.bf16.msra.mxu0 0
      %1046 = vmatprep.subr.bf16.mxu0 0
      %1047 = vmatpush2.bf16.msra.mxu0 0
      %1048 = vmatprep.subr.bf16.mxu0 0
      %1049 = vmatpush2.bf16.msra.mxu0 0
      %1050 = vmatprep.subr.bf16.mxu0 0
      %1051 = vmatpush2.bf16.msra.mxu0 0
      %1052 = vmatprep.subr.bf16.mxu0 0
      %1053 = vmatpush2.bf16.msra.mxu0 0
      %1054 = vmatprep.subr.bf16.mxu0 0
      %1055 = vmatpush2.bf16.msra.mxu0 0
      %1056 = vmatprep.subr.bf16.mxu0 0
      %1057 = vmatpush2.bf16.msra.mxu0 0
      %1058 = vmatprep.subr.bf16.mxu0 0
      %1059 = vmatpush2.bf16.msra.mxu0 0
      %1060 = vmatprep.mubr.bf16.mxu0 0
      %1061 = vmatmul.mubr.bf16.gmra.mxu0 %v1017
      %v1062 = vpop.f32.mrf.mxu0
      %v1063 = vadd.f32 %v958, %v1062
      %v1064 = vpop.f32.mrf.mxu0
      %v1065 = vpop.f32.mrf.mxu0
      %v1066 = vadd.f32 %v963, %v1065
      %v1067 = vpop.f32.mrf.mxu0
      %1068 = vmatprep.mubr.bf16.mxu0 0
      %1069 = vmatmul.mubr.bf16.gmra.mxu0 %v1020
      %v1070 = vpop.f32.mrf.mxu0
      %v1071 = vadd.f32 %v968, %v1070
      %v1072 = vpop.f32.mrf.mxu0
      %v1073 = vpop.f32.mrf.mxu0
      %v1074 = vadd.f32 %v973, %v1073
      %v1075 = vpop.f32.mrf.mxu0
      %1076 = vmatprep.mubr.bf16.mxu0 0
      %1077 = vmatmul.mubr.bf16.gmra.mxu0 %v1023
      %v1078 = vpop.f32.mrf.mxu0
      %v1079 = vadd.f32 %v978, %v1078
      %v1080 = vpop.f32.mrf.mxu0
      %v1081 = vpop.f32.mrf.mxu0
      %v1082 = vadd.f32 %v983, %v1081
      %v1083 = vpop.f32.mrf.mxu0
      %1084 = vmatprep.mubr.bf16.mxu0 0
      %1085 = vmatmul.mubr.bf16.gmra.mxu0 %v1026
      %v1086 = vpop.f32.mrf.mxu0
      %v1087 = vadd.f32 %v988, %v1086
      %v1088 = vpop.f32.mrf.mxu0
      %v1089 = vpop.f32.mrf.mxu0
      %v1090 = vadd.f32 %v993, %v1089
      %v1091 = vpop.f32.mrf.mxu0
      %1092 = vdwg.mxu0
      %v1093 = vld [vmem:[%s536] sm:$0xff]
      %v1094 = vld [vmem:[%s536 + $0x8] sm:$0xff]
      %v1095 = vld [vmem:[%s536 + $0x10] sm:$0xff]
      %v1096 = vld [vmem:[%s536 + $0x18] sm:$0xff]
      %v1097 = vld [vmem:[%s536 + $0x20] sm:$0xff]
      %v1098 = vld [vmem:[%s536 + $0x28] sm:$0xff]
      %v1099 = vld [vmem:[%s536 + $0x30] sm:$0xff]
      %v1100 = vld [vmem:[%s536 + $0x38] sm:$0xff]
      %v1101 = vld [vmem:[%s536 + $0x40] sm:$0xff]
      %v1102 = vld [vmem:[%s536 + $0x48] sm:$0xff]
      %v1103 = vld [vmem:[%s536 + $0x50] sm:$0xff]
      %v1104 = vld [vmem:[%s536 + $0x58] sm:$0xff]
      %v1105 = vld [vmem:[%s536 + $0x60] sm:$0xff]
      %v1106 = vld [vmem:[%s536 + $0x68] sm:$0xff]
      %v1107 = vld [vmem:[%s536 + $0x70] sm:$0xff]
      %v1108 = vld [vmem:[%s536 + $0x78] sm:$0xff]
      %v1109 = vxor.u32 %v1093, 2147483648
      %v1110 = vxor.u32 %v1094, 2147483648
      %v1111 = vxor.u32 %v1095, 2147483648
      %v1112 = vxor.u32 %v1096, 2147483648
      %v1113 = vxor.u32 %v1097, 2147483648
      %v1114 = vxor.u32 %v1098, 2147483648
      %v1115 = vxor.u32 %v1099, 2147483648
      %v1116 = vxor.u32 %v1100, 2147483648
      %v1117 = vxor.u32 %v1101, 2147483648
      %v1118 = vxor.u32 %v1102, 2147483648
      %v1119 = vxor.u32 %v1103, 2147483648
      %v1120 = vxor.u32 %v1104, 2147483648
      %v1121 = vxor.u32 %v1105, 2147483648
      %v1122 = vxor.u32 %v1106, 2147483648
      %v1123 = vxor.u32 %v1107, 2147483648
      %v1124 = vxor.u32 %v1108, 2147483648
      %v1125 = vmul.f32 %v1109, 1.442695
      %v1126 = vpow.pop %v1125
      %v1127 = vmul.f32 %v1110, 1.442695
      %v1128 = vpow.pop %v1127
      %v1129 = vmul.f32 %v1111, 1.442695
      %v1130 = vpow.pop %v1129
      %v1131 = vmul.f32 %v1112, 1.442695
      %v1132 = vpow.pop %v1131
      %v1133 = vmul.f32 %v1113, 1.442695
      %v1134 = vpow.pop %v1133
      %v1135 = vmul.f32 %v1114, 1.442695
      %v1136 = vpow.pop %v1135
      %v1137 = vmul.f32 %v1115, 1.442695
      %v1138 = vpow.pop %v1137
      %v1139 = vmul.f32 %v1116, 1.442695
      %v1140 = vpow.pop %v1139
      %v1141 = vmul.f32 %v1117, 1.442695
      %v1142 = vpow.pop %v1141
      %v1143 = vmul.f32 %v1118, 1.442695
      %v1144 = vpow.pop %v1143
      %v1145 = vmul.f32 %v1119, 1.442695
      %v1146 = vpow.pop %v1145
      %v1147 = vmul.f32 %v1120, 1.442695
      %v1148 = vpow.pop %v1147
      %v1149 = vmul.f32 %v1121, 1.442695
      %v1150 = vpow.pop %v1149
      %v1151 = vmul.f32 %v1122, 1.442695
      %v1152 = vpow.pop %v1151
      %v1153 = vmul.f32 %v1123, 1.442695
      %v1154 = vpow.pop %v1153
      %v1155 = vmul.f32 %v1124, 1.442695
      %v1156 = vpow.pop %v1155
      %v1157 = vadd.f32 %v1126, 1.0
      %v1158 = vadd.f32 %v1128, 1.0
      %v1159 = vadd.f32 %v1130, 1.0
      %v1160 = vadd.f32 %v1132, 1.0
      %v1161 = vadd.f32 %v1134, 1.0
      %v1162 = vadd.f32 %v1136, 1.0
      %v1163 = vadd.f32 %v1138, 1.0
      %v1164 = vadd.f32 %v1140, 1.0
      %v1165 = vadd.f32 %v1142, 1.0
      %v1166 = vadd.f32 %v1144, 1.0
      %v1167 = vadd.f32 %v1146, 1.0
      %v1168 = vadd.f32 %v1148, 1.0
      %v1169 = vadd.f32 %v1150, 1.0
      %v1170 = vadd.f32 %v1152, 1.0
      %v1171 = vadd.f32 %v1154, 1.0
      %v1172 = vadd.f32 %v1156, 1.0
      %v1173 = vrcp.pop %v1157
      %v1174 = vmul.f32 1.0, %v1173
      %v1175 = vrcp.pop %v1158
      %v1176 = vmul.f32 1.0, %v1175
      %v1177 = vrcp.pop %v1159
      %v1178 = vmul.f32 1.0, %v1177
      %v1179 = vrcp.pop %v1160
      %v1180 = vmul.f32 1.0, %v1179
      %v1181 = vrcp.pop %v1161
      %v1182 = vmul.f32 1.0, %v1181
      %v1183 = vrcp.pop %v1162
      %v1184 = vmul.f32 1.0, %v1183
      %v1185 = vrcp.pop %v1163
      %v1186 = vmul.f32 1.0, %v1185
      %v1187 = vrcp.pop %v1164
      %v1188 = vmul.f32 1.0, %v1187
      %v1189 = vrcp.pop %v1165
      %v1190 = vmul.f32 1.0, %v1189
      %v1191 = vrcp.pop %v1166
      %v1192 = vmul.f32 1.0, %v1191
      %v1193 = vrcp.pop %v1167
      %v1194 = vmul.f32 1.0, %v1193
      %v1195 = vrcp.pop %v1168
      %v1196 = vmul.f32 1.0, %v1195
      %v1197 = vrcp.pop %v1169
      %v1198 = vmul.f32 1.0, %v1197
      %v1199 = vrcp.pop %v1170
      %v1200 = vmul.f32 1.0, %v1199
      %v1201 = vrcp.pop %v1171
      %v1202 = vmul.f32 1.0, %v1201
      %v1203 = vrcp.pop %v1172
      %v1204 = vmul.f32 1.0, %v1203
      %v1205 = vmul.f32 %v1093, %v1174
      %v1206 = vmul.f32 %v1094, %v1176
      %v1207 = vmul.f32 %v1095, %v1178
      %v1208 = vmul.f32 %v1096, %v1180
      %v1209 = vmul.f32 %v1097, %v1182
      %v1210 = vmul.f32 %v1098, %v1184
      %v1211 = vmul.f32 %v1099, %v1186
      %v1212 = vmul.f32 %v1100, %v1188
      %v1213 = vmul.f32 %v1101, %v1190
      %v1214 = vmul.f32 %v1102, %v1192
      %v1215 = vmul.f32 %v1103, %v1194
      %v1216 = vmul.f32 %v1104, %v1196
      %v1217 = vmul.f32 %v1105, %v1198
      %v1218 = vmul.f32 %v1106, %v1200
      %v1219 = vmul.f32 %v1107, %v1202
      %v1220 = vmul.f32 %v1108, %v1204
      %v1221 = vpack.c.bf16 %v1206, %v1205
      %v1222 = vpack.c.bf16 %v1208, %v1207
      %v1223 = vpack.c.bf16 %v1210, %v1209
      %v1224 = vpack.c.bf16 %v1212, %v1211
      %v1225 = vpack.c.bf16 %v1214, %v1213
      %v1226 = vpack.c.bf16 %v1216, %v1215
      %v1227 = vpack.c.bf16 %v1218, %v1217
      %v1228 = vpack.c.bf16 %v1220, %v1219
      %v1229 = vld [vmem:[%s7] sm:$0xf]
      %v1230 = vld [vmem:[%s7 + $0x4] sm:$0xf]
      %v1231 = vld [vmem:[%s7 + $0x8] sm:$0xf]
      %v1232 = vld [vmem:[%s7 + $0xc] sm:$0xf]
      %v1233 = vld [vmem:[%s7 + $0x10] sm:$0xf]
      %v1234 = vld [vmem:[%s7 + $0x14] sm:$0xf]
      %v1235 = vld [vmem:[%s7 + $0x18] sm:$0xf]
      %v1236 = vld [vmem:[%s7 + $0x1c] sm:$0xf]
      %v1237 = vld [vmem:[%s8] sm:$0xff]
      %v1238 = vld [vmem:[%s8 + $0x8] sm:$0xff]
      %v1239 = vld [vmem:[%s8 + $0x10] sm:$0xff]
      %v1240 = vld [vmem:[%s8 + $0x18] sm:$0xff]
      %v1241 = vld [vmem:[%s8 + $0x20] sm:$0xff]
      %v1242 = vld [vmem:[%s8 + $0x28] sm:$0xff]
      %v1243 = vld [vmem:[%s8 + $0x30] sm:$0xff]
      %v1244 = vld [vmem:[%s8 + $0x38] sm:$0xff]
      %v1253 = vunpack.c.l.b16 %v1229
      %v1254 = vunpack.c.l.b16 %v1230
      %v1255 = vunpack.c.l.b16 %v1231
      %v1256 = vunpack.c.l.b16 %v1232
      %v1257 = vunpack.c.l.b16 %v1233
      %v1258 = vunpack.c.l.b16 %v1234
      %v1259 = vunpack.c.l.b16 %v1235
      %v1260 = vunpack.c.l.b16 %v1236
      %v1261 = vpack.c.b16 %v1254, %v1253
      %v1262 = vpack.c.b16 %v1256, %v1255
      %v1263 = vpack.c.b16 %v1258, %v1257
      %v1264 = vpack.c.b16 %v1260, %v1259
      %1269 = vmatprep.subr.bf16.mxu0 0
      %1270 = vmatpush1.bf16.msra.mxu0 %v1228
      %1271 = vmatprep.subr.bf16.mxu0 0
      %1272 = vmatpush1.bf16.msra.mxu0 %v1227
      %1273 = vmatprep.subr.bf16.mxu0 0
      %1274 = vmatpush1.bf16.msra.mxu0 %v1226
      %1275 = vmatprep.subr.bf16.mxu0 0
      %1276 = vmatpush1.bf16.msra.mxu0 %v1225
      %1277 = vmatprep.subr.bf16.mxu0 0
      %1278 = vmatpush1.bf16.msra.mxu0 %v1224
      %1279 = vmatprep.subr.bf16.mxu0 0
      %1280 = vmatpush1.bf16.msra.mxu0 %v1223
      %1281 = vmatprep.subr.bf16.mxu0 0
      %1282 = vmatpush1.bf16.msra.mxu0 %v1222
      %1283 = vmatprep.subr.bf16.mxu0 0
      %1284 = vmatpush1.bf16.msra.mxu0 %v1221
      %1285 = vmatprep.subr.bf16.mxu0 0
      %1286 = vmatpush2.bf16.msra.mxu0 0
      %1287 = vmatprep.subr.bf16.mxu0 0
      %1288 = vmatpush2.bf16.msra.mxu0 0
      %1289 = vmatprep.subr.bf16.mxu0 0
      %1290 = vmatpush2.bf16.msra.mxu0 0
      %1291 = vmatprep.subr.bf16.mxu0 0
      %1292 = vmatpush2.bf16.msra.mxu0 0
      %1293 = vmatprep.subr.bf16.mxu0 0
      %1294 = vmatpush2.bf16.msra.mxu0 0
      %1295 = vmatprep.subr.bf16.mxu0 0
      %1296 = vmatpush2.bf16.msra.mxu0 0
      %1297 = vmatprep.subr.bf16.mxu0 0
      %1298 = vmatpush2.bf16.msra.mxu0 0
      %1299 = vmatprep.subr.bf16.mxu0 0
      %1300 = vmatpush2.bf16.msra.mxu0 0
      %1301 = vmatprep.mubr.bf16.mxu0 0
      %1302 = vmatmul.mubr.bf16.gmra.mxu0 %v1261
      %v1303 = vpop.f32.mrf.mxu0
      %v1304 = vadd.f32 %v1237, %v1303
      %v1305 = vpop.f32.mrf.mxu0
      %v1306 = vpop.f32.mrf.mxu0
      %v1307 = vadd.f32 %v1238, %v1306
      %v1308 = vpop.f32.mrf.mxu0
      %1309 = vmatprep.mubr.bf16.mxu0 0
      %1310 = vmatmul.mubr.bf16.gmra.mxu0 %v1262
      %v1311 = vpop.f32.mrf.mxu0
      %v1312 = vadd.f32 %v1239, %v1311
      %v1313 = vpop.f32.mrf.mxu0
      %v1314 = vpop.f32.mrf.mxu0
      %v1315 = vadd.f32 %v1240, %v1314
      %v1316 = vpop.f32.mrf.mxu0
      %1317 = vmatprep.mubr.bf16.mxu0 0
      %1318 = vmatmul.mubr.bf16.gmra.mxu0 %v1263
      %v1319 = vpop.f32.mrf.mxu0
      %v1320 = vadd.f32 %v1241, %v1319
      %v1321 = vpop.f32.mrf.mxu0
      %v1322 = vpop.f32.mrf.mxu0
      %v1323 = vadd.f32 %v1242, %v1322
      %v1324 = vpop.f32.mrf.mxu0
      %1325 = vmatprep.mubr.bf16.mxu0 0
      %1326 = vmatmul.mubr.bf16.gmra.mxu0 %v1264
      %v1327 = vpop.f32.mrf.mxu0
      %v1328 = vadd.f32 %v1243, %v1327
      %v1329 = vpop.f32.mrf.mxu0
      %v1330 = vpop.f32.mrf.mxu0
      %v1331 = vadd.f32 %v1244, %v1330
      %v1332 = vpop.f32.mrf.mxu0
      %1333 = vdwg.mxu0
      %1335 = vset.pattern.permute.xlu0 0
      %1336 = vperm.xlu0 %1335, %v1304
      %v1337 = vpop.permute.xlu0 %1336
      %1340 = vset.pattern.permute.xlu0 0
      %1341 = vperm.xlu0 %1340, %v1307
      %v1342 = vpop.permute.xlu0 %1341
      %1345 = vset.pattern.permute.xlu0 0
      %1346 = vperm.xlu0 %1345, %v1312
      %v1347 = vpop.permute.xlu0 %1346
      %1350 = vset.pattern.permute.xlu0 0
      %1351 = vperm.xlu0 %1350, %v1315
      %v1352 = vpop.permute.xlu0 %1351
      %1355 = vset.pattern.permute.xlu0 0
      %1356 = vperm.xlu0 %1355, %v1320
      %v1357 = vpop.permute.xlu0 %1356
      %1360 = vset.pattern.permute.xlu0 0
      %1361 = vperm.xlu0 %1360, %v1323
      %v1362 = vpop.permute.xlu0 %1361
      %1365 = vset.pattern.permute.xlu0 0
      %1366 = vperm.xlu0 %1365, %v1328
      %v1367 = vpop.permute.xlu0 %1366
      %1370 = vset.pattern.permute.xlu0 0
      %1371 = vperm.xlu0 %1370, %v1331
      %v1372 = vpop.permute.xlu0 %1371
      %v1374 = vadd.f32 %v1063, %v1337
      %v1375 = vadd.f32 %v1066, %v1342
      %v1376 = vadd.f32 %v1071, %v1347
      %v1377 = vadd.f32 %v1074, %v1352
      %v1378 = vadd.f32 %v1079, %v1357
      %v1379 = vadd.f32 %v1082, %v1362
      %v1380 = vadd.f32 %v1087, %v1367
      %v1381 = vadd.f32 %v1090, %v1372
      %v1382 = vld [vmem:[%s9] sm:$0xff]
      %v1383 = vld [vmem:[%s9 + $0x8] sm:$0xff]
      %v1384 = vld [vmem:[%s9 + $0x10] sm:$0xff]
      %v1385 = vld [vmem:[%s9 + $0x18] sm:$0xff]
      %v1386 = vld [vmem:[%s9 + $0x20] sm:$0xff]
      %v1387 = vld [vmem:[%s9 + $0x28] sm:$0xff]
      %v1388 = vld [vmem:[%s9 + $0x30] sm:$0xff]
      %v1389 = vld [vmem:[%s9 + $0x38] sm:$0xff]
      %v1390 = vld [vmem:[%s10] sm:$0xff]
      %v1391 = vld [vmem:[%s10 + $0x8] sm:$0xff]
      %v1392 = vld [vmem:[%s10 + $0x10] sm:$0xff]
      %v1393 = vld [vmem:[%s10 + $0x18] sm:$0xff]
      %v1394 = vld [vmem:[%s10 + $0x20] sm:$0xff]
      %v1395 = vld [vmem:[%s10 + $0x28] sm:$0xff]
      %v1396 = vld [vmem:[%s10 + $0x30] sm:$0xff]
      %v1397 = vld [vmem:[%s10 + $0x38] sm:$0xff]
      %v1398 = vld [vmem:[%s11] sm:$0xff]
      %v1399 = vld [vmem:[%s11 + $0x8] sm:$0xff]
      %v1400 = vld [vmem:[%s11 + $0x10] sm:$0xff]
      %v1401 = vld [vmem:[%s11 + $0x18] sm:$0xff]
      %v1402 = vld [vmem:[%s11 + $0x20] sm:$0xff]
      %v1403 = vld [vmem:[%s11 + $0x28] sm:$0xff]
      %v1404 = vld [vmem:[%s11 + $0x30] sm:$0xff]
      %v1405 = vld [vmem:[%s11 + $0x38] sm:$0xff]
      %v1406 = vsel %vm559, %v1374, 0.0
      %1407 = vadd.xlane.f32.xlu0 %v1406
      %v1408 = vpop.xlane.xlu0 %1407
      %v1409 = vsel %vm559, %v1375, 0.0
      %1410 = vadd.xlane.f32.xlu0 %v1409
      %v1411 = vpop.xlane.xlu0 %1410
      %v1412 = vsel %vm559, %v1376, 0.0
      %1413 = vadd.xlane.f32.xlu0 %v1412
      %v1414 = vpop.xlane.xlu0 %1413
      %v1415 = vsel %vm559, %v1377, 0.0
      %1416 = vadd.xlane.f32.xlu0 %v1415
      %v1417 = vpop.xlane.xlu0 %1416
      %v1418 = vsel %vm559, %v1378, 0.0
      %1419 = vadd.xlane.f32.xlu0 %v1418
      %v1420 = vpop.xlane.xlu0 %1419
      %v1421 = vsel %vm559, %v1379, 0.0
      %1422 = vadd.xlane.f32.xlu0 %v1421
      %v1423 = vpop.xlane.xlu0 %1422
      %v1424 = vsel %vm559, %v1380, 0.0
      %1425 = vadd.xlane.f32.xlu0 %v1424
      %v1426 = vpop.xlane.xlu0 %1425
      %v1427 = vsel %vm559, %v1381, 0.0
      %1428 = vadd.xlane.f32.xlu0 %v1427
      %v1429 = vpop.xlane.xlu0 %1428
      %vm1430 = vcmask 523264
      %v1432 = vsel %vm1430, %v1382, 0
      %v1435 = vsel %vm1430, %v1383, 0
      %v1438 = vsel %vm1430, %v1384, 0
      %v1441 = vsel %vm1430, %v1385, 0
      %v1444 = vsel %vm1430, %v1386, 0
      %v1447 = vsel %vm1430, %v1387, 0
      %v1450 = vsel %vm1430, %v1388, 0
      %v1453 = vsel %vm1430, %v1389, 0
      %1455 = vmatprep.subr.mxu0 0.0
      %1456 = vmatpush1.msra.mxu0 0.0
      %1457 = vmatprep.subr.mxu0 0.0
      %1458 = vmatpush1.msra.mxu0 0.0
      %1459 = vmatprep.subr.mxu0 0.0
      %1460 = vmatpush1.msra.mxu0 0.0
      %1461 = vmatprep.subr.mxu0 0.0
      %1462 = vmatpush1.msra.mxu0 0.0
      %1463 = vmatprep.subr.mxu0 0.0
      %1464 = vmatpush1.msra.mxu0 0.0
      %1465 = vmatprep.subr.mxu0 0.0
      %1466 = vmatpush1.msra.mxu0 0.0
      %1467 = vmatprep.subr.mxu0 0.0
      %1468 = vmatpush1.msra.mxu0 0.0
      %1469 = vmatprep.subr.mxu0 0.0
      %1470 = vmatpush1.msra.mxu0 0.0
      %1471 = vmatprep.subr.mxu0 0.0
      %1472 = vmatpush1.msra.mxu0 %v1429
      %1473 = vmatprep.subr.mxu0 0.0
      %1474 = vmatpush1.msra.mxu0 %v1426
      %1475 = vmatprep.subr.mxu0 0.0
      %1476 = vmatpush1.msra.mxu0 %v1423
      %1477 = vmatprep.subr.mxu0 0.0
      %1478 = vmatpush1.msra.mxu0 %v1420
      %1479 = vmatprep.subr.mxu0 0.0
      %1480 = vmatpush1.msra.mxu0 %v1417
      %1481 = vmatprep.subr.mxu0 0.0
      %1482 = vmatpush1.msra.mxu0 %v1414
      %1483 = vmatprep.subr.mxu0 0.0
      %1484 = vmatpush1.msra.mxu0 %v1411
      %1485 = vmatprep.subr.mxu0 0.0
      %1486 = vmatpush1.msra.mxu0 %v1408
      %1487 = vmatprep.subr.mxu0 0.0
      %1488 = vmatpush2.msra.mxu0 0.0
      %1489 = vmatprep.subr.mxu0 0.0
      %1490 = vmatpush2.msra.mxu0 0.0
      %1491 = vmatprep.subr.mxu0 0.0
      %1492 = vmatpush2.msra.mxu0 0.0
      %1493 = vmatprep.subr.mxu0 0.0
      %1494 = vmatpush2.msra.mxu0 0.0
      %1495 = vmatprep.subr.mxu0 0.0
      %1496 = vmatpush2.msra.mxu0 0.0
      %1497 = vmatprep.subr.mxu0 0.0
      %1498 = vmatpush2.msra.mxu0 0.0
      %1499 = vmatprep.subr.mxu0 0.0
      %1500 = vmatpush2.msra.mxu0 0.0
      %1501 = vmatprep.subr.mxu0 0.0
      %1502 = vmatpush2.msra.mxu0 0.0
      %1503 = vmatprep.subr.mxu0 0.0
      %1504 = vmatpush2.msra.mxu0 0.0
      %1505 = vmatprep.subr.mxu0 0.0
      %1506 = vmatpush2.msra.mxu0 0.0
      %1507 = vmatprep.subr.mxu0 0.0
      %1508 = vmatpush2.msra.mxu0 0.0
      %1509 = vmatprep.subr.mxu0 0.0
      %1510 = vmatpush2.msra.mxu0 0.0
      %1511 = vmatprep.subr.mxu0 0.0
      %1512 = vmatpush2.msra.mxu0 0.0
      %1513 = vmatprep.subr.mxu0 0.0
      %1514 = vmatpush2.msra.mxu0 0.0
      %1515 = vmatprep.subr.mxu0 0.0
      %1516 = vmatpush2.msra.mxu0 0.0
      %1517 = vmatprep.subr.mxu0 0.0
      %1518 = vmatpush2.msra.mxu0 0.0
      %1519 = vmatprep.mubr.f32.mxu0 0.0
      %1520 = vmatmul.mubr.f32.gmra.mxu0 %v1432
      %v1521 = vpop.f32.mrf.mxu0
      %v1522 = vadd.f32 0.0, %v1521
      %v1523 = vpop.f32.mrf.mxu0
      %1524 = vmatprep.mubr.f32.mxu0 0.0
      %1525 = vmatmul.mubr.f32.gmra.mxu0 %v1435
      %v1526 = vpop.f32.mrf.mxu0
      %v1527 = vadd.f32 0.0, %v1526
      %v1528 = vpop.f32.mrf.mxu0
      %1529 = vmatprep.mubr.f32.mxu0 0.0
      %1530 = vmatmul.mubr.f32.gmra.mxu0 %v1438
      %v1531 = vpop.f32.mrf.mxu0
      %v1532 = vadd.f32 0.0, %v1531
      %v1533 = vpop.f32.mrf.mxu0
      %1534 = vmatprep.mubr.f32.mxu0 0.0
      %1535 = vmatmul.mubr.f32.gmra.mxu0 %v1441
      %v1536 = vpop.f32.mrf.mxu0
      %v1537 = vadd.f32 0.0, %v1536
      %v1538 = vpop.f32.mrf.mxu0
      %1539 = vmatprep.mubr.f32.mxu0 0.0
      %1540 = vmatmul.mubr.f32.gmra.mxu0 %v1444
      %v1541 = vpop.f32.mrf.mxu0
      %v1542 = vadd.f32 0.0, %v1541
      %v1543 = vpop.f32.mrf.mxu0
      %1544 = vmatprep.mubr.f32.mxu0 0.0
      %1545 = vmatmul.mubr.f32.gmra.mxu0 %v1447
      %v1546 = vpop.f32.mrf.mxu0
      %v1547 = vadd.f32 0.0, %v1546
      %v1548 = vpop.f32.mrf.mxu0
      %1549 = vmatprep.mubr.f32.mxu0 0.0
      %1550 = vmatmul.mubr.f32.gmra.mxu0 %v1450
      %v1551 = vpop.f32.mrf.mxu0
      %v1552 = vadd.f32 0.0, %v1551
      %v1553 = vpop.f32.mrf.mxu0
      %1554 = vmatprep.mubr.f32.mxu0 0.0
      %1555 = vmatmul.mubr.f32.gmra.mxu0 %v1453
      %v1556 = vpop.f32.mrf.mxu0
      %v1557 = vadd.f32 0.0, %v1556
      %v1558 = vpop.f32.mrf.mxu0
      %1559 = vdwg.mxu0
      %v1560 = vrcp.pop 32.0
      %v1561 = vmul.f32 %v1522, %v1560
      %v1562 = vmul.f32 %v1527, %v1560
      %v1563 = vmul.f32 %v1532, %v1560
      %v1564 = vmul.f32 %v1537, %v1560
      %v1565 = vmul.f32 %v1542, %v1560
      %v1566 = vmul.f32 %v1547, %v1560
      %v1567 = vmul.f32 %v1552, %v1560
      %v1568 = vmul.f32 %v1557, %v1560
      %1570 = vset.pattern.permute.xlu0 0
      %1571 = vperm.xlu0 %1570, %v1561
      %v1572 = vpop.permute.xlu0 %1571
      %1575 = vset.pattern.permute.xlu0 0
      %1576 = vperm.xlu0 %1575, %v1562
      %v1577 = vpop.permute.xlu0 %1576
      %1580 = vset.pattern.permute.xlu0 0
      %1581 = vperm.xlu0 %1580, %v1563
      %v1582 = vpop.permute.xlu0 %1581
      %1585 = vset.pattern.permute.xlu0 0
      %1586 = vperm.xlu0 %1585, %v1564
      %v1587 = vpop.permute.xlu0 %1586
      %1590 = vset.pattern.permute.xlu0 0
      %1591 = vperm.xlu0 %1590, %v1565
      %v1592 = vpop.permute.xlu0 %1591
      %1595 = vset.pattern.permute.xlu0 0
      %1596 = vperm.xlu0 %1595, %v1566
      %v1597 = vpop.permute.xlu0 %1596
      %1600 = vset.pattern.permute.xlu0 0
      %1601 = vperm.xlu0 %1600, %v1567
      %v1602 = vpop.permute.xlu0 %1601
      %1605 = vset.pattern.permute.xlu0 0
      %1606 = vperm.xlu0 %1605, %v1568
      %v1607 = vpop.permute.xlu0 %1606
      %v1609 = vsub.f32 %v1374, %v1572
      %v1610 = vsub.f32 %v1375, %v1577
      %v1611 = vsub.f32 %v1376, %v1582
      %v1612 = vsub.f32 %v1377, %v1587
      %v1613 = vsub.f32 %v1378, %v1592
      %v1614 = vsub.f32 %v1379, %v1597
      %v1615 = vsub.f32 %v1380, %v1602
      %v1616 = vsub.f32 %v1381, %v1607
      %v1617 = vmul.f32 %v1609, %v1609
      %v1618 = vmul.f32 %v1610, %v1610
      %v1619 = vmul.f32 %v1611, %v1611
      %v1620 = vmul.f32 %v1612, %v1612
      %v1621 = vmul.f32 %v1613, %v1613
      %v1622 = vmul.f32 %v1614, %v1614
      %v1623 = vmul.f32 %v1615, %v1615
      %v1624 = vmul.f32 %v1616, %v1616
      %v1625 = vsel %vm559, %v1617, 0.0
      %1626 = vadd.xlane.f32.xlu0 %v1625
      %v1627 = vpop.xlane.xlu0 %1626
      %v1628 = vsel %vm559, %v1618, 0.0
      %1629 = vadd.xlane.f32.xlu0 %v1628
      %v1630 = vpop.xlane.xlu0 %1629
      %v1631 = vsel %vm559, %v1619, 0.0
      %1632 = vadd.xlane.f32.xlu0 %v1631
      %v1633 = vpop.xlane.xlu0 %1632
      %v1634 = vsel %vm559, %v1620, 0.0
      %1635 = vadd.xlane.f32.xlu0 %v1634
      %v1636 = vpop.xlane.xlu0 %1635
      %v1637 = vsel %vm559, %v1621, 0.0
      %1638 = vadd.xlane.f32.xlu0 %v1637
      %v1639 = vpop.xlane.xlu0 %1638
      %v1640 = vsel %vm559, %v1622, 0.0
      %1641 = vadd.xlane.f32.xlu0 %v1640
      %v1642 = vpop.xlane.xlu0 %1641
      %v1643 = vsel %vm559, %v1623, 0.0
      %1644 = vadd.xlane.f32.xlu0 %v1643
      %v1645 = vpop.xlane.xlu0 %1644
      %v1646 = vsel %vm559, %v1624, 0.0
      %1647 = vadd.xlane.f32.xlu0 %v1646
      %v1648 = vpop.xlane.xlu0 %1647
      %1649 = vmatprep.subr.mxu0 0.0
      %1650 = vmatpush1.msra.mxu0 0.0
      %1651 = vmatprep.subr.mxu0 0.0
      %1652 = vmatpush1.msra.mxu0 0.0
      %1653 = vmatprep.subr.mxu0 0.0
      %1654 = vmatpush1.msra.mxu0 0.0
      %1655 = vmatprep.subr.mxu0 0.0
      %1656 = vmatpush1.msra.mxu0 0.0
      %1657 = vmatprep.subr.mxu0 0.0
      %1658 = vmatpush1.msra.mxu0 0.0
      %1659 = vmatprep.subr.mxu0 0.0
      %1660 = vmatpush1.msra.mxu0 0.0
      %1661 = vmatprep.subr.mxu0 0.0
      %1662 = vmatpush1.msra.mxu0 0.0
      %1663 = vmatprep.subr.mxu0 0.0
      %1664 = vmatpush1.msra.mxu0 0.0
      %1665 = vmatprep.subr.mxu0 0.0
      %1666 = vmatpush1.msra.mxu0 %v1648
      %1667 = vmatprep.subr.mxu0 0.0
      %1668 = vmatpush1.msra.mxu0 %v1645
      %1669 = vmatprep.subr.mxu0 0.0
      %1670 = vmatpush1.msra.mxu0 %v1642
      %1671 = vmatprep.subr.mxu0 0.0
      %1672 = vmatpush1.msra.mxu0 %v1639
      %1673 = vmatprep.subr.mxu0 0.0
      %1674 = vmatpush1.msra.mxu0 %v1636
      %1675 = vmatprep.subr.mxu0 0.0
      %1676 = vmatpush1.msra.mxu0 %v1633
      %1677 = vmatprep.subr.mxu0 0.0
      %1678 = vmatpush1.msra.mxu0 %v1630
      %1679 = vmatprep.subr.mxu0 0.0
      %1680 = vmatpush1.msra.mxu0 %v1627
      %1681 = vmatprep.subr.mxu0 0.0
      %1682 = vmatpush2.msra.mxu0 0.0
      %1683 = vmatprep.subr.mxu0 0.0
      %1684 = vmatpush2.msra.mxu0 0.0
      %1685 = vmatprep.subr.mxu0 0.0
      %1686 = vmatpush2.msra.mxu0 0.0
      %1687 = vmatprep.subr.mxu0 0.0
      %1688 = vmatpush2.msra.mxu0 0.0
      %1689 = vmatprep.subr.mxu0 0.0
      %1690 = vmatpush2.msra.mxu0 0.0
      %1691 = vmatprep.subr.mxu0 0.0
      %1692 = vmatpush2.msra.mxu0 0.0
      %1693 = vmatprep.subr.mxu0 0.0
      %1694 = vmatpush2.msra.mxu0 0.0
      %1695 = vmatprep.subr.mxu0 0.0
      %1696 = vmatpush2.msra.mxu0 0.0
      %1697 = vmatprep.subr.mxu0 0.0
      %1698 = vmatpush2.msra.mxu0 0.0
      %1699 = vmatprep.subr.mxu0 0.0
      %1700 = vmatpush2.msra.mxu0 0.0
      %1701 = vmatprep.subr.mxu0 0.0
      %1702 = vmatpush2.msra.mxu0 0.0
      %1703 = vmatprep.subr.mxu0 0.0
      %1704 = vmatpush2.msra.mxu0 0.0
      %1705 = vmatprep.subr.mxu0 0.0
      %1706 = vmatpush2.msra.mxu0 0.0
      %1707 = vmatprep.subr.mxu0 0.0
      %1708 = vmatpush2.msra.mxu0 0.0
      %1709 = vmatprep.subr.mxu0 0.0
      %1710 = vmatpush2.msra.mxu0 0.0
      %1711 = vmatprep.subr.mxu0 0.0
      %1712 = vmatpush2.msra.mxu0 0.0
      %1713 = vmatprep.mubr.f32.mxu0 0.0
      %1714 = vmatmul.mubr.f32.gmra.mxu0 %v1432
      %v1715 = vpop.f32.mrf.mxu0
      %v1716 = vadd.f32 0.0, %v1715
      %v1717 = vpop.f32.mrf.mxu0
      %1718 = vmatprep.mubr.f32.mxu0 0.0
      %1719 = vmatmul.mubr.f32.gmra.mxu0 %v1435
      %v1720 = vpop.f32.mrf.mxu0
      %v1721 = vadd.f32 0.0, %v1720
      %v1722 = vpop.f32.mrf.mxu0
      %1723 = vmatprep.mubr.f32.mxu0 0.0
      %1724 = vmatmul.mubr.f32.gmra.mxu0 %v1438
      %v1725 = vpop.f32.mrf.mxu0
      %v1726 = vadd.f32 0.0, %v1725
      %v1727 = vpop.f32.mrf.mxu0
      %1728 = vmatprep.mubr.f32.mxu0 0.0
      %1729 = vmatmul.mubr.f32.gmra.mxu0 %v1441
      %v1730 = vpop.f32.mrf.mxu0
      %v1731 = vadd.f32 0.0, %v1730
      %v1732 = vpop.f32.mrf.mxu0
      %1733 = vmatprep.mubr.f32.mxu0 0.0
      %1734 = vmatmul.mubr.f32.gmra.mxu0 %v1444
      %v1735 = vpop.f32.mrf.mxu0
      %v1736 = vadd.f32 0.0, %v1735
      %v1737 = vpop.f32.mrf.mxu0
      %1738 = vmatprep.mubr.f32.mxu0 0.0
      %1739 = vmatmul.mubr.f32.gmra.mxu0 %v1447
      %v1740 = vpop.f32.mrf.mxu0
      %v1741 = vadd.f32 0.0, %v1740
      %v1742 = vpop.f32.mrf.mxu0
      %1743 = vmatprep.mubr.f32.mxu0 0.0
      %1744 = vmatmul.mubr.f32.gmra.mxu0 %v1450
      %v1745 = vpop.f32.mrf.mxu0
      %v1746 = vadd.f32 0.0, %v1745
      %v1747 = vpop.f32.mrf.mxu0
      %1748 = vmatprep.mubr.f32.mxu0 0.0
      %1749 = vmatmul.mubr.f32.gmra.mxu0 %v1453
      %v1750 = vpop.f32.mrf.mxu0
      %v1751 = vadd.f32 0.0, %v1750
      %v1752 = vpop.f32.mrf.mxu0
      %1753 = vdwg.mxu0
      %v1754 = vmul.f32 %v1716, %v1560
      %v1755 = vmul.f32 %v1721, %v1560
      %v1756 = vmul.f32 %v1726, %v1560
      %v1757 = vmul.f32 %v1731, %v1560
      %v1758 = vmul.f32 %v1736, %v1560
      %v1759 = vmul.f32 %v1741, %v1560
      %v1760 = vmul.f32 %v1746, %v1560
      %v1761 = vmul.f32 %v1751, %v1560
      %v1762 = vadd.f32 %v1754, 1e-05
      %v1763 = vadd.f32 %v1755, 1e-05
      %v1764 = vadd.f32 %v1756, 1e-05
      %v1765 = vadd.f32 %v1757, 1e-05
      %v1766 = vadd.f32 %v1758, 1e-05
      %v1767 = vadd.f32 %v1759, 1e-05
      %v1768 = vadd.f32 %v1760, 1e-05
      %v1769 = vadd.f32 %v1761, 1e-05
      %v1770 = vrsqrt.pop %v1762
      %v1771 = vrsqrt.pop %v1763
      %v1772 = vrsqrt.pop %v1764
      %v1773 = vrsqrt.pop %v1765
      %v1774 = vrsqrt.pop %v1766
      %v1775 = vrsqrt.pop %v1767
      %v1776 = vrsqrt.pop %v1768
      %v1777 = vrsqrt.pop %v1769
      %1779 = vset.pattern.permute.xlu0 0
      %1780 = vperm.xlu0 %1779, %v1770
      %v1781 = vpop.permute.xlu0 %1780
      %1784 = vset.pattern.permute.xlu0 0
      %1785 = vperm.xlu0 %1784, %v1771
      %v1786 = vpop.permute.xlu0 %1785
      %1789 = vset.pattern.permute.xlu0 0
      %1790 = vperm.xlu0 %1789, %v1772
      %v1791 = vpop.permute.xlu0 %1790
      %1794 = vset.pattern.permute.xlu0 0
      %1795 = vperm.xlu0 %1794, %v1773
      %v1796 = vpop.permute.xlu0 %1795
      %1799 = vset.pattern.permute.xlu0 0
      %1800 = vperm.xlu0 %1799, %v1774
      %v1801 = vpop.permute.xlu0 %1800
      %1804 = vset.pattern.permute.xlu0 0
      %1805 = vperm.xlu0 %1804, %v1775
      %v1806 = vpop.permute.xlu0 %1805
      %1809 = vset.pattern.permute.xlu0 0
      %1810 = vperm.xlu0 %1809, %v1776
      %v1811 = vpop.permute.xlu0 %1810
      %1814 = vset.pattern.permute.xlu0 0
      %1815 = vperm.xlu0 %1814, %v1777
      %v1816 = vpop.permute.xlu0 %1815
      %v1818 = vmul.f32 %v1609, %v1781
      %v1819 = vmul.f32 %v1610, %v1786
      %v1820 = vmul.f32 %v1611, %v1791
      %v1821 = vmul.f32 %v1612, %v1796
      %v1822 = vmul.f32 %v1613, %v1801
      %v1823 = vmul.f32 %v1614, %v1806
      %v1824 = vmul.f32 %v1615, %v1811
      %v1825 = vmul.f32 %v1616, %v1816
      %1827 = vset.pattern.permute.xlu0 0
      %1828 = vperm.xlu0 %1827, %v1390
      %v1829 = vpop.permute.xlu0 %1828
      %1832 = vset.pattern.permute.xlu0 0
      %1833 = vperm.xlu0 %1832, %v1391
      %v1834 = vpop.permute.xlu0 %1833
      %1837 = vset.pattern.permute.xlu0 0
      %1838 = vperm.xlu0 %1837, %v1392
      %v1839 = vpop.permute.xlu0 %1838
      %1842 = vset.pattern.permute.xlu0 0
      %1843 = vperm.xlu0 %1842, %v1393
      %v1844 = vpop.permute.xlu0 %1843
      %1847 = vset.pattern.permute.xlu0 0
      %1848 = vperm.xlu0 %1847, %v1394
      %v1849 = vpop.permute.xlu0 %1848
      %1852 = vset.pattern.permute.xlu0 0
      %1853 = vperm.xlu0 %1852, %v1395
      %v1854 = vpop.permute.xlu0 %1853
      %1857 = vset.pattern.permute.xlu0 0
      %1858 = vperm.xlu0 %1857, %v1396
      %v1859 = vpop.permute.xlu0 %1858
      %1862 = vset.pattern.permute.xlu0 0
      %1863 = vperm.xlu0 %1862, %v1397
      %v1864 = vpop.permute.xlu0 %1863
      %v1866 = vmul.f32 %v1818, %v1829
      %v1867 = vmul.f32 %v1819, %v1834
      %v1868 = vmul.f32 %v1820, %v1839
      %v1869 = vmul.f32 %v1821, %v1844
      %v1870 = vmul.f32 %v1822, %v1849
      %v1871 = vmul.f32 %v1823, %v1854
      %v1872 = vmul.f32 %v1824, %v1859
      %v1873 = vmul.f32 %v1825, %v1864
      %1875 = vset.pattern.permute.xlu0 0
      %1876 = vperm.xlu0 %1875, %v1398
      %v1877 = vpop.permute.xlu0 %1876
      %1880 = vset.pattern.permute.xlu0 0
      %1881 = vperm.xlu0 %1880, %v1399
      %v1882 = vpop.permute.xlu0 %1881
      %1885 = vset.pattern.permute.xlu0 0
      %1886 = vperm.xlu0 %1885, %v1400
      %v1887 = vpop.permute.xlu0 %1886
      %1890 = vset.pattern.permute.xlu0 0
      %1891 = vperm.xlu0 %1890, %v1401
      %v1892 = vpop.permute.xlu0 %1891
      %1895 = vset.pattern.permute.xlu0 0
      %1896 = vperm.xlu0 %1895, %v1402
      %v1897 = vpop.permute.xlu0 %1896
      %1900 = vset.pattern.permute.xlu0 0
      %1901 = vperm.xlu0 %1900, %v1403
      %v1902 = vpop.permute.xlu0 %1901
      %1905 = vset.pattern.permute.xlu0 0
      %1906 = vperm.xlu0 %1905, %v1404
      %v1907 = vpop.permute.xlu0 %1906
      %1910 = vset.pattern.permute.xlu0 0
      %1911 = vperm.xlu0 %1910, %v1405
      %v1912 = vpop.permute.xlu0 %1911
      %v1914 = vadd.f32 %v1866, %v1877
      %v1915 = vadd.f32 %v1867, %v1882
      %v1916 = vadd.f32 %v1868, %v1887
      %v1917 = vadd.f32 %v1869, %v1892
      %v1918 = vadd.f32 %v1870, %v1897
      %v1919 = vadd.f32 %v1871, %v1902
      %v1920 = vadd.f32 %v1872, %v1907
      %v1921 = vadd.f32 %v1873, %v1912
      %v1922 = vxor.u32 %v1914, 2147483648
      %v1923 = vxor.u32 %v1915, 2147483648
      %v1924 = vxor.u32 %v1916, 2147483648
      %v1925 = vxor.u32 %v1917, 2147483648
      %v1926 = vxor.u32 %v1918, 2147483648
      %v1927 = vxor.u32 %v1919, 2147483648
      %v1928 = vxor.u32 %v1920, 2147483648
      %v1929 = vxor.u32 %v1921, 2147483648
      %v1930 = vmul.f32 %v1922, 1.442695
      %v1931 = vpow.pop %v1930
      %v1932 = vmul.f32 %v1923, 1.442695
      %v1933 = vpow.pop %v1932
      %v1934 = vmul.f32 %v1924, 1.442695
      %v1935 = vpow.pop %v1934
      %v1936 = vmul.f32 %v1925, 1.442695
      %v1937 = vpow.pop %v1936
      %v1938 = vmul.f32 %v1926, 1.442695
      %v1939 = vpow.pop %v1938
      %v1940 = vmul.f32 %v1927, 1.442695
      %v1941 = vpow.pop %v1940
      %v1942 = vmul.f32 %v1928, 1.442695
      %v1943 = vpow.pop %v1942
      %v1944 = vmul.f32 %v1929, 1.442695
      %v1945 = vpow.pop %v1944
      %v1946 = vadd.f32 %v1931, 1.0
      %v1947 = vadd.f32 %v1933, 1.0
      %v1948 = vadd.f32 %v1935, 1.0
      %v1949 = vadd.f32 %v1937, 1.0
      %v1950 = vadd.f32 %v1939, 1.0
      %v1951 = vadd.f32 %v1941, 1.0
      %v1952 = vadd.f32 %v1943, 1.0
      %v1953 = vadd.f32 %v1945, 1.0
      %v1954 = vrcp.pop %v1946
      %v1955 = vmul.f32 1.0, %v1954
      %v1956 = vrcp.pop %v1947
      %v1957 = vmul.f32 1.0, %v1956
      %v1958 = vrcp.pop %v1948
      %v1959 = vmul.f32 1.0, %v1958
      %v1960 = vrcp.pop %v1949
      %v1961 = vmul.f32 1.0, %v1960
      %v1962 = vrcp.pop %v1950
      %v1963 = vmul.f32 1.0, %v1962
      %v1964 = vrcp.pop %v1951
      %v1965 = vmul.f32 1.0, %v1964
      %v1966 = vrcp.pop %v1952
      %v1967 = vmul.f32 1.0, %v1966
      %v1968 = vrcp.pop %v1953
      %v1969 = vmul.f32 1.0, %v1968
      %v1970 = vmul.f32 %v1914, %v1955
      %v1971 = vmul.f32 %v1915, %v1957
      %v1972 = vmul.f32 %v1916, %v1959
      %v1973 = vmul.f32 %v1917, %v1961
      %v1974 = vmul.f32 %v1918, %v1963
      %v1975 = vmul.f32 %v1919, %v1965
      %v1976 = vmul.f32 %v1920, %v1967
      %v1977 = vmul.f32 %v1921, %v1969
      %v1978 = vld [vmem:[%s12] sm:$0xff]
      %v1979 = vld [vmem:[%s12 + $0x8] sm:$0xff]
      %v1980 = vld [vmem:[%s12 + $0x10] sm:$0xff]
      %v1981 = vld [vmem:[%s12 + $0x18] sm:$0xff]
      %v1982 = vld [vmem:[%s12 + $0x20] sm:$0xff]
      %v1983 = vld [vmem:[%s12 + $0x28] sm:$0xff]
      %v1984 = vld [vmem:[%s12 + $0x30] sm:$0xff]
      %v1985 = vld [vmem:[%s12 + $0x38] sm:$0xff]
      %v1986 = vld [vmem:[%s13] sm:$0xff]
      %v1987 = vld [vmem:[%s13 + $0x8] sm:$0xff]
      %v1988 = vld [vmem:[%s13 + $0x10] sm:$0xff]
      %v1989 = vld [vmem:[%s13 + $0x18] sm:$0xff]
      %v1990 = vld [vmem:[%s13 + $0x20] sm:$0xff]
      %v1991 = vld [vmem:[%s13 + $0x28] sm:$0xff]
      %v1992 = vld [vmem:[%s13 + $0x30] sm:$0xff]
      %v1993 = vld [vmem:[%s13 + $0x38] sm:$0xff]
      %v1994 = vpack.c.bf16 %v1971, %v1970
      %v1995 = vpack.c.bf16 %v1973, %v1972
      %v1996 = vpack.c.bf16 %v1975, %v1974
      %v1997 = vpack.c.bf16 %v1977, %v1976
      %2002 = vrot.lane.b32.xlu0 %v1994, 1
      %v2003 = vpop.permute.xlu0 %2002
      %2004 = vrot.lane.b32.xlu0 %v1995, 1
      %v2005 = vpop.permute.xlu0 %2004
      %2006 = vrot.lane.b32.xlu0 %v1996, 1
      %v2007 = vpop.permute.xlu0 %2006
      %2008 = vrot.lane.b32.xlu0 %v1997, 1
      %v2009 = vpop.permute.xlu0 %2008
      %v2011 = vsel %vm936, 0, %v2003
      %v2014 = vsel %vm936, 0, %v2005
      %v2017 = vsel %vm936, 0, %v2007
      %v2020 = vsel %vm936, 0, %v2009
      %2022 = vrot.lane.b32.xlu0 %v1994, 127
      %v2023 = vpop.permute.xlu0 %2022
      %2024 = vrot.lane.b32.xlu0 %v1995, 127
      %v2025 = vpop.permute.xlu0 %2024
      %2026 = vrot.lane.b32.xlu0 %v1996, 127
      %v2027 = vpop.permute.xlu0 %2026
      %2028 = vrot.lane.b32.xlu0 %v1997, 127
      %v2029 = vpop.permute.xlu0 %2028
      %v2031 = vsel %vm948, %v2023, 0
      %v2034 = vsel %vm948, %v2025, 0
      %v2037 = vsel %vm948, %v2027, 0
      %v2040 = vsel %vm948, %v2029, 0
      %2043 = vset.pattern.permute.xlu0 0
      %2044 = vperm.xlu0 %2043, %v1986
      %v2045 = vpop.permute.xlu0 %2044
      %2048 = vset.pattern.permute.xlu0 0
      %2049 = vperm.xlu0 %2048, %v1987
      %v2050 = vpop.permute.xlu0 %2049
      %2053 = vset.pattern.permute.xlu0 0
      %2054 = vperm.xlu0 %2053, %v1988
      %v2055 = vpop.permute.xlu0 %2054
      %2058 = vset.pattern.permute.xlu0 0
      %2059 = vperm.xlu0 %2058, %v1989
      %v2060 = vpop.permute.xlu0 %2059
      %2063 = vset.pattern.permute.xlu0 0
      %2064 = vperm.xlu0 %2063, %v1990
      %v2065 = vpop.permute.xlu0 %2064
      %2068 = vset.pattern.permute.xlu0 0
      %2069 = vperm.xlu0 %2068, %v1991
      %v2070 = vpop.permute.xlu0 %2069
      %2073 = vset.pattern.permute.xlu0 0
      %2074 = vperm.xlu0 %2073, %v1992
      %v2075 = vpop.permute.xlu0 %2074
      %2078 = vset.pattern.permute.xlu0 0
      %2079 = vperm.xlu0 %2078, %v1993
      %v2080 = vpop.permute.xlu0 %2079
      %v2090 = vunpack.c.l.b16 %v1978
      %v2091 = vunpack.c.h.b16 %v1978
      %v2092 = vunpack.c.l.b16 %v1979
      %v2093 = vunpack.c.h.b16 %v1979
      %v2094 = vunpack.c.l.b16 %v1980
      %v2095 = vunpack.c.h.b16 %v1980
      %v2096 = vunpack.c.l.b16 %v1981
      %v2097 = vunpack.c.h.b16 %v1981
      %v2098 = vunpack.c.l.b16 %v1982
      %v2099 = vunpack.c.h.b16 %v1982
      %v2100 = vunpack.c.l.b16 %v1983
      %v2101 = vunpack.c.h.b16 %v1983
      %v2102 = vunpack.c.l.b16 %v1984
      %v2103 = vunpack.c.h.b16 %v1984
      %v2104 = vunpack.c.l.b16 %v1985
      %v2105 = vunpack.c.h.b16 %v1985
      %v2106 = vpack.c.b16 %v2092, %v2090
      %v2107 = vpack.c.b16 %v2093, %v2091
      %v2108 = vpack.c.b16 %v2096, %v2094
      %v2109 = vpack.c.b16 %v2097, %v2095
      %v2110 = vpack.c.b16 %v2100, %v2098
      %v2111 = vpack.c.b16 %v2101, %v2099
      %v2112 = vpack.c.b16 %v2104, %v2102
      %v2113 = vpack.c.b16 %v2105, %v2103
      %v2119 = vsel %vm1430, %v2107, 0
      %v2122 = vsel %vm1430, %v2109, 0
      %v2125 = vsel %vm1430, %v2111, 0
      %v2128 = vsel %vm1430, %v2113, 0
      %2130 = vmatprep.subr.bf16.mxu0 0
      %2131 = vmatpush1.bf16.msra.mxu0 %v1997
      %2132 = vmatprep.subr.bf16.mxu0 0
      %2133 = vmatpush1.bf16.msra.mxu0 %v1996
      %2134 = vmatprep.subr.bf16.mxu0 0
      %2135 = vmatpush1.bf16.msra.mxu0 %v1995
      %2136 = vmatprep.subr.bf16.mxu0 0
      %2137 = vmatpush1.bf16.msra.mxu0 %v1994
      %2138 = vmatprep.subr.bf16.mxu0 0
      %2139 = vmatpush1.bf16.msra.mxu0 %v2020
      %2140 = vmatprep.subr.bf16.mxu0 0
      %2141 = vmatpush1.bf16.msra.mxu0 %v2017
      %2142 = vmatprep.subr.bf16.mxu0 0
      %2143 = vmatpush1.bf16.msra.mxu0 %v2014
      %2144 = vmatprep.subr.bf16.mxu0 0
      %2145 = vmatpush1.bf16.msra.mxu0 %v2011
      %2146 = vmatprep.subr.bf16.mxu0 0
      %2147 = vmatpush2.bf16.msra.mxu0 0
      %2148 = vmatprep.subr.bf16.mxu0 0
      %2149 = vmatpush2.bf16.msra.mxu0 0
      %2150 = vmatprep.subr.bf16.mxu0 0
      %2151 = vmatpush2.bf16.msra.mxu0 0
      %2152 = vmatprep.subr.bf16.mxu0 0
      %2153 = vmatpush2.bf16.msra.mxu0 0
      %2154 = vmatprep.subr.bf16.mxu0 0
      %2155 = vmatpush2.bf16.msra.mxu0 %v2040
      %2156 = vmatprep.subr.bf16.mxu0 0
      %2157 = vmatpush2.bf16.msra.mxu0 %v2037
      %2158 = vmatprep.subr.bf16.mxu0 0
      %2159 = vmatpush2.bf16.msra.mxu0 %v2034
      %2160 = vmatprep.subr.bf16.mxu0 0
      %2161 = vmatpush2.bf16.msra.mxu0 %v2031
      %2162 = vmatprep.mubr.bf16.mxu0 %v2119
      %2163 = vmatmul.mubr.bf16.gmra.mxu0 %v2106
      %v2164 = vpop.f32.mrf.mxu0
      %v2165 = vadd.f32 %v2045, %v2164
      %v2166 = vpop.f32.mrf.mxu0
      %v2167 = vpop.f32.mrf.mxu0
      %v2168 = vadd.f32 %v2050, %v2167
      %v2169 = vpop.f32.mrf.mxu0
      %2170 = vmatprep.mubr.bf16.mxu0 %v2122
      %2171 = vmatmul.mubr.bf16.gmra.mxu0 %v2108
      %v2172 = vpop.f32.mrf.mxu0
      %v2173 = vadd.f32 %v2055, %v2172
      %v2174 = vpop.f32.mrf.mxu0
      %v2175 = vpop.f32.mrf.mxu0
      %v2176 = vadd.f32 %v2060, %v2175
      %v2177 = vpop.f32.mrf.mxu0
      %2178 = vmatprep.mubr.bf16.mxu0 %v2125
      %2179 = vmatmul.mubr.bf16.gmra.mxu0 %v2110
      %v2180 = vpop.f32.mrf.mxu0
      %v2181 = vadd.f32 %v2065, %v2180
      %v2182 = vpop.f32.mrf.mxu0
      %v2183 = vpop.f32.mrf.mxu0
      %v2184 = vadd.f32 %v2070, %v2183
      %v2185 = vpop.f32.mrf.mxu0
      %2186 = vmatprep.mubr.bf16.mxu0 %v2128
      %2187 = vmatmul.mubr.bf16.gmra.mxu0 %v2112
      %v2188 = vpop.f32.mrf.mxu0
      %v2189 = vadd.f32 %v2075, %v2188
      %v2190 = vpop.f32.mrf.mxu0
      %v2191 = vpop.f32.mrf.mxu0
      %v2192 = vadd.f32 %v2080, %v2191
      %v2193 = vpop.f32.mrf.mxu0
      %2194 = vdwg.mxu0
      %v2195 = vld [vmem:[%s14] sm:$0xf]
      %v2196 = vld [vmem:[%s14 + $0x4] sm:$0xf]
      %v2197 = vld [vmem:[%s14 + $0x8] sm:$0xf]
      %v2198 = vld [vmem:[%s14 + $0xc] sm:$0xf]
      %v2199 = vld [vmem:[%s14 + $0x10] sm:$0xf]
      %v2200 = vld [vmem:[%s14 + $0x14] sm:$0xf]
      %v2201 = vld [vmem:[%s14 + $0x18] sm:$0xf]
      %v2202 = vld [vmem:[%s14 + $0x1c] sm:$0xf]
      %v2203 = vpack.c.bf16 %v544, %v543
      %v2204 = vpack.c.bf16 %v546, %v545
      %v2205 = vld [vmem:[%s15] sm:$0xff]
      %v2206 = vld [vmem:[%s15 + $0x8] sm:$0xff]
      %v2207 = vld [vmem:[%s15 + $0x10] sm:$0xff]
      %v2208 = vld [vmem:[%s15 + $0x18] sm:$0xff]
      %v2209 = vld [vmem:[%s15 + $0x20] sm:$0xff]
      %v2210 = vld [vmem:[%s15 + $0x28] sm:$0xff]
      %v2211 = vld [vmem:[%s15 + $0x30] sm:$0xff]
      %v2212 = vld [vmem:[%s15 + $0x38] sm:$0xff]
      %2214 = vset.pattern.permute.xlu0 0
      %2215 = vperm.xlu0 %2214, %v2205
      %v2216 = vpop.permute.xlu0 %2215
      %2219 = vset.pattern.permute.xlu0 0
      %2220 = vperm.xlu0 %2219, %v2206
      %v2221 = vpop.permute.xlu0 %2220
      %2224 = vset.pattern.permute.xlu0 0
      %2225 = vperm.xlu0 %2224, %v2207
      %v2226 = vpop.permute.xlu0 %2225
      %2229 = vset.pattern.permute.xlu0 0
      %2230 = vperm.xlu0 %2229, %v2208
      %v2231 = vpop.permute.xlu0 %2230
      %2234 = vset.pattern.permute.xlu0 0
      %2235 = vperm.xlu0 %2234, %v2209
      %v2236 = vpop.permute.xlu0 %2235
      %2239 = vset.pattern.permute.xlu0 0
      %2240 = vperm.xlu0 %2239, %v2210
      %v2241 = vpop.permute.xlu0 %2240
      %2244 = vset.pattern.permute.xlu0 0
      %2245 = vperm.xlu0 %2244, %v2211
      %v2246 = vpop.permute.xlu0 %2245
      %2249 = vset.pattern.permute.xlu0 0
      %2250 = vperm.xlu0 %2249, %v2212
      %v2251 = vpop.permute.xlu0 %2250
      %v2261 = vunpack.c.l.b16 %v2195
      %v2262 = vunpack.c.l.b16 %v2196
      %v2263 = vunpack.c.l.b16 %v2197
      %v2264 = vunpack.c.l.b16 %v2198
      %v2265 = vunpack.c.l.b16 %v2199
      %v2266 = vunpack.c.l.b16 %v2200
      %v2267 = vunpack.c.l.b16 %v2201
      %v2268 = vunpack.c.l.b16 %v2202
      %v2269 = vpack.c.b16 %v2262, %v2261
      %v2270 = vpack.c.b16 %v2264, %v2263
      %v2271 = vpack.c.b16 %v2266, %v2265
      %v2272 = vpack.c.b16 %v2268, %v2267
      %v2274 = vsel %vm572, %v2269, 0
      %v2277 = vsel %vm572, %v2270, 0
      %v2280 = vsel %vm572, %v2271, 0
      %v2283 = vsel %vm572, %v2272, 0
      %2285 = vmatprep.subr.bf16.mxu0 0
      %2286 = vmatpush1.bf16.msra.mxu0 0
      %2287 = vmatprep.subr.bf16.mxu0 0
      %2288 = vmatpush1.bf16.msra.mxu0 0
      %2289 = vmatprep.subr.bf16.mxu0 0
      %2290 = vmatpush1.bf16.msra.mxu0 0
      %2291 = vmatprep.subr.bf16.mxu0 0
      %2292 = vmatpush1.bf16.msra.mxu0 0
      %2293 = vmatprep.subr.bf16.mxu0 0
      %2294 = vmatpush1.bf16.msra.mxu0 0
      %2295 = vmatprep.subr.bf16.mxu0 0
      %2296 = vmatpush1.bf16.msra.mxu0 0
      %2297 = vmatprep.subr.bf16.mxu0 0
      %2298 = vmatpush1.bf16.msra.mxu0 %v2204
      %2299 = vmatprep.subr.bf16.mxu0 0
      %2300 = vmatpush1.bf16.msra.mxu0 %v2203
      %2301 = vmatprep.subr.bf16.mxu0 0
      %2302 = vmatpush2.bf16.msra.mxu0 0
      %2303 = vmatprep.subr.bf16.mxu0 0
      %2304 = vmatpush2.bf16.msra.mxu0 0
      %2305 = vmatprep.subr.bf16.mxu0 0
      %2306 = vmatpush2.bf16.msra.mxu0 0
      %2307 = vmatprep.subr.bf16.mxu0 0
      %2308 = vmatpush2.bf16.msra.mxu0 0
      %2309 = vmatprep.subr.bf16.mxu0 0
      %2310 = vmatpush2.bf16.msra.mxu0 0
      %2311 = vmatprep.subr.bf16.mxu0 0
      %2312 = vmatpush2.bf16.msra.mxu0 0
      %2313 = vmatprep.subr.bf16.mxu0 0
      %2314 = vmatpush2.bf16.msra.mxu0 0
      %2315 = vmatprep.subr.bf16.mxu0 0
      %2316 = vmatpush2.bf16.msra.mxu0 0
      %2317 = vmatprep.mubr.bf16.mxu0 0
      %2318 = vmatmul.mubr.bf16.gmra.mxu0 %v2274
      %v2319 = vpop.f32.mrf.mxu0
      %v2320 = vadd.f32 %v2216, %v2319
      %v2321 = vpop.f32.mrf.mxu0
      %v2322 = vpop.f32.mrf.mxu0
      %v2323 = vadd.f32 %v2221, %v2322
      %v2324 = vpop.f32.mrf.mxu0
      %2325 = vmatprep.mubr.bf16.mxu0 0
      %2326 = vmatmul.mubr.bf16.gmra.mxu0 %v2277
      %v2327 = vpop.f32.mrf.mxu0
      %v2328 = vadd.f32 %v2226, %v2327
      %v2329 = vpop.f32.mrf.mxu0
      %v2330 = vpop.f32.mrf.mxu0
      %v2331 = vadd.f32 %v2231, %v2330
      %v2332 = vpop.f32.mrf.mxu0
      %2333 = vmatprep.mubr.bf16.mxu0 0
      %2334 = vmatmul.mubr.bf16.gmra.mxu0 %v2280
      %v2335 = vpop.f32.mrf.mxu0
      %v2336 = vadd.f32 %v2236, %v2335
      %v2337 = vpop.f32.mrf.mxu0
      %v2338 = vpop.f32.mrf.mxu0
      %v2339 = vadd.f32 %v2241, %v2338
      %v2340 = vpop.f32.mrf.mxu0
      %2341 = vmatprep.mubr.bf16.mxu0 0
      %2342 = vmatmul.mubr.bf16.gmra.mxu0 %v2283
      %v2343 = vpop.f32.mrf.mxu0
      %v2344 = vadd.f32 %v2246, %v2343
      %v2345 = vpop.f32.mrf.mxu0
      %v2346 = vpop.f32.mrf.mxu0
      %v2347 = vadd.f32 %v2251, %v2346
      %v2348 = vpop.f32.mrf.mxu0
      %2349 = vdwg.mxu0
      %v2350 = vadd.f32 %v2165, %v2320
      %v2351 = vadd.f32 %v2168, %v2323
      %v2352 = vadd.f32 %v2173, %v2328
      %v2353 = vadd.f32 %v2176, %v2331
      %v2354 = vadd.f32 %v2181, %v2336
      %v2355 = vadd.f32 %v2184, %v2339
      %v2356 = vadd.f32 %v2189, %v2344
      %v2357 = vadd.f32 %v2192, %v2347
      %2358 = vst.msk [vmem:[%s541] sm:$0xff] %vm559, %v2350
      %2359 = vst.msk [vmem:[%s541 + $0x8] sm:$0xff] %vm559, %v2351
      %2360 = vst.msk [vmem:[%s541 + $0x10] sm:$0xff] %vm559, %v2352
      %2361 = vst.msk [vmem:[%s541 + $0x18] sm:$0xff] %vm559, %v2353
      %2362 = vst.msk [vmem:[%s541 + $0x20] sm:$0xff] %vm559, %v2354
      %2363 = vst.msk [vmem:[%s541 + $0x28] sm:$0xff] %vm559, %v2355
      %2364 = vst.msk [vmem:[%s541 + $0x30] sm:$0xff] %vm559, %v2356
      %2365 = vst.msk [vmem:[%s541 + $0x38] sm:$0xff] %vm559, %v2357
      %p2366 = scmp.lt.s32.totalorder %s27, 1
      %s2367 = scalar_select %p2366, %s27, 1
      %s2368 = smul.addr %s2367, 8
      %s2369 = smul.addr %s2368, 8
      %s2370 = scalar_lea.vmem %s16, %s2369
      // Predicated region
      $region85: #{_lambda_.1} parent=83 // pred_check
        %p2371 = pneg %p391
      $region86: #{_lambda_.1} parent=83 // pred_check_branch
        %2373 = sbr.rel (%p2371) target = $region88
      $region87: #{_lambda_.1} parent=83 // pred_region
        _
      $region88: #{_lambda_.1} parent=83 // pred_fallthru
        _
    $region84: #{_lambda_.1} parent=5 // pred_fallthru
      _
    %p2374 = scmp.le.s32.totalorder 2, %s22
    // Predicated region
    $region89: #{_lambda_.1} parent=5 // pred_check
      %p2375 = pneg %p2374
    $region90: #{_lambda_.1} parent=5 // pred_check_branch
      %2377 = sbr.rel (%p2375) target = $region92
    $region91: #{_lambda_.1} parent=5 // pred_region
      %s2378 = ssub.s32 %s22, 2
      // Predicated region
      $region93: #{_lambda_.1} parent=91 // pred_check
        %p2379 = pneg %p397
      $region94: #{_lambda_.1} parent=91 // pred_check_branch
        %2381 = sbr.rel (%p2379) target = $region96
      $region95: #{_lambda_.1} parent=91 // pred_region
        %p2382 = scmp.lt.s32.totalorder %s28, 1
        %s2383 = scalar_select %p2382, %s28, 1
        %s2384 = smul.addr %s2383, 8
        %s2385 = smul.addr %s2384, 8
        %s2386 = scalar_lea.vmem %s16, %s2385
      $region96: #{_lambda_.1} parent=91 // pred_fallthru
        _
    $region92: #{_lambda_.1} parent=5 // pred_fallthru
      _
  $region6: #{_lambda_.1} parent=0 // loop_footer
    %s26 = sadd.s32 1, %s22
  $region7: #{_lambda_.1} parent=0 // loop_footer_branch
    %21 = sbr.rel target = $region3
  $region8: #{_lambda_.1} parent=0 // loop_exit
    _

</llo_original>
